<compile_context>
chip_gen: v7x
topology: tpu7x:2x2x1
jax: 0.10.0
libtpu: 0.0.40
codegen_flags: <defaults>
</compile_context>

<pallas_src>
import math
import functools

import jax
import jax.numpy as jnp
from jax.experimental import pallas as pl
from jax.experimental.pallas import tpu as pltpu


def _mhsa_kernel(x_q_ref, x_kv_ref, mask_ref,
                 wq_ref, bq_ref, wkv_ref, bkv_ref, wo_ref, bo_ref,
                 out_ref,
                 k_sc, v_sc, ctx_sc,
                 *, n_heads, d_k):
    """One (batch, query-tile) grid step.

    x_q_ref : (Tq, D) f32   query rows of this tile
    x_kv_ref: (S, D)  f32   full sequence (K/V projection, only read at qi==0)
    mask_ref: (1, S)  f32   1.0 = keep key, 0.0 = masked key
    wq_ref  : (D, D)  bf16  Wq^T            bq_ref : (1, D)  f32
    wkv_ref : (D, 2D) bf16  [Wk^T | Wv^T]   bkv_ref: (1, 2D) f32
    wo_ref  : (D, D)  bf16  Wo^T            bo_ref : (1, D)  f32
    out_ref : (Tq, D)
    k_sc    : (D, S)  bf16  K^T cache (lane-dense), persistent across q tiles
    v_sc    : (S, D)  bf16  V cache, persistent across q tiles
    ctx_sc  : (Tq, D) bf16  merged per-head contexts (fully rewritten per step)
    """
    D = n_heads * d_k
    S = k_sc.shape[1]
    tq = out_ref.shape[0]
    qi = pl.program_id(1)

    # --- K / V projection: once per batch element, cached across query tiles.
    @pl.when(qi == 0)
    def _():
        x_kv = x_kv_ref[...].astype(jnp.bfloat16)                   # (S, D)
        kv = jnp.dot(x_kv, wkv_ref[...],
                     preferred_element_type=jnp.float32) + bkv_ref[...]  # (S,2D) f32
        # K stored transposed -> lane dim is S (dense); one transpose per batch.
        k_sc[...] = kv[:, :D].T.astype(jnp.bfloat16)                # (D, S)
        v_sc[...] = kv[:, D:].astype(jnp.bfloat16)                  # (S, D)

    # --- Q projection: one full-width (Tq,D)@(D,D) matmul, bf16 operands.
    x_q = x_q_ref[...].astype(jnp.bfloat16)                         # (Tq, D)
    q_all = jnp.dot(x_q, wq_ref[...],
                    preferred_element_type=jnp.float32) + bq_ref[...]
    q_all = (q_all * jnp.float32(1.0 / math.sqrt(d_k))).astype(jnp.bfloat16)

    # --- mask bias / post-softmax mask, broadcast ONCE (not per head).
    mask = mask_ref[...]                                            # (1, S)
    bias = jnp.broadcast_to((mask - 1.0) * 1e9, (tq, S))            # 0 / -1e9
    mask_b = jnp.broadcast_to(mask, (tq, S))

    # --- per-head attention; contexts written into a merged (Tq, D) scratch.
    for hd in range(n_heads):
        q_h = q_all[:, hd * d_k:(hd + 1) * d_k]                     # (Tq, d_k)
        k_h = k_sc[hd * d_k:(hd + 1) * d_k, :]                      # (d_k, S)
        s = jnp.dot(q_h, k_h, preferred_element_type=jnp.float32) + bias
        m = jnp.max(s, axis=-1, keepdims=True)
        e = jnp.exp(s - m)                                          # f32 (v5e-safe)
        denom = jnp.sum(e, axis=-1, keepdims=True)
        # EUP reciprocal; post-softmax zeroing matches masked_fill(mask==0, 0).
        attn = e * pl.reciprocal(denom, approx=True) * mask_b       # (Tq, S)
        ctx_h = jnp.dot(attn.astype(jnp.bfloat16),
                        v_sc[:, hd * d_k:(hd + 1) * d_k],
                        preferred_element_type=jnp.float32)         # (Tq, d_k)
        ctx_sc[:, hd * d_k:(hd + 1) * d_k] = ctx_h.astype(jnp.bfloat16)

    # --- single full-width output projection over the merged heads.
    out = jnp.dot(ctx_sc[...], wo_ref[...],
                  preferred_element_type=jnp.float32) + bo_ref[...]
    out_ref[...] = out.astype(out_ref.dtype)


def multi_headed_self_attention(x, mask, params, *, n_heads, q_tile=256):
    """x:(B,S,D) f32, mask:(B,1,S) float {0,1} (1=keep, 0=masked).
    params = (wq,bq, wk,bk, wv,bv, wo,bo) in PyTorch nn.Linear layout:
    W:(D,D) applied as y = x @ W^T + b, b:(D,)."""
    B, S, D = x.shape
    assert D % n_heads == 0
    assert q_tile % 128 == 0
    d_k = D // n_heads
    wq, bq, wk, bk, wv, bv, wo, bo = params

    x = x.astype(jnp.float32)
    mask = mask.astype(jnp.float32)                 # kernel assumes float {0,1}

    # Weights pre-transposed / concatenated and cast to bf16 in the wrapper.
    wq_t = wq.T.astype(jnp.bfloat16)                                 # (D, D)
    wkv_t = jnp.concatenate([wk.T, wv.T], axis=1).astype(jnp.bfloat16)  # (D, 2D)
    wo_t = wo.T.astype(jnp.bfloat16)                                 # (D, D)
    bq_2d = bq.reshape(1, D).astype(jnp.float32)
    bkv_2d = jnp.concatenate([bk, bv]).reshape(1, 2 * D).astype(jnp.float32)
    bo_2d = bo.reshape(1, D).astype(jnp.float32)

    # Query tile: full extent if it fits, else a 128-multiple tile with
    # pl.cdiv tail handling (padded tail rows are computed but never stored).
    tq = S if S <= q_tile else q_tile
    n_q = pl.cdiv(S, tq)

    # VMEM residency estimate -> scoped limit (capped at device capacity).
    vmem_bytes = (
        2 * tq * D * 4            # x_q tiles (double-buffered, f32)
        + S * D * 4               # x_kv (single-buffered, f32)
        + 2 * S * 4               # mask
        + 2 * D * D * 2 + 2 * D * D * 2   # Wq, Wo, Wkv bf16 (single-buffered)
        + 8 * D * 4               # biases
        + 2 * S * D * 2           # K^T + V bf16 caches
        + tq * D * 2              # merged-context scratch
        + 2 * tq * D * 4          # output tiles (double-buffered)
        + 8 * tq * S * 4          # live (Tq, S) f32 softmax intermediates
    )
    try:
        vmem_cap = int(pltpu.get_tpu_info().vmem_capacity_bytes)
    except Exception:
        vmem_cap = 64 << 20       # v7x per-TC capacity: safe on every generation
    vmem_limit = int(min(max(vmem_bytes * 5 // 4 + (2 << 20), 16 << 20), vmem_cap))

    # Single-buffer grid-invariant / rarely-refetched blocks.
    def _spec(shape, index_map, single_buffered=False):
        if single_buffered:
            try:
                return pl.BlockSpec(shape, index_map, pipeline_mode=pl.Buffered(1))
            except Exception:
                pass
        return pl.BlockSpec(shape, index_map)

    const = lambda b, q: (0, 0)

    flops = B * (8 * S * D * D + 4 * S * S * D)
    transcendentals = B * n_heads * S * S
    bytes_accessed = 4 * (2 * B * S * D + B * S * D + B * S) + 2 * 4 * D * D

    kernel = functools.partial(_mhsa_kernel, n_heads=n_heads, d_k=d_k)

    return pl.pallas_call(
        kernel,
        out_shape=jax.ShapeDtypeStruct((B, S, D), x.dtype),
        grid_spec=pltpu.PrefetchScalarGridSpec(
            num_scalar_prefetch=0,
            grid=(B, n_q),
            in_specs=[
                pl.BlockSpec((None, tq, D), lambda b, q: (b, q, 0)),       # x (queries)
                _spec((None, S, D), lambda b, q: (b, 0, 0), True),         # x (keys/values)
                pl.BlockSpec((None, 1, S), lambda b, q: (b, 0, 0)),        # mask
                _spec((D, D), const, True),                                # Wq^T   bf16
                _spec((1, D), const, True),                                # bq
                _spec((D, 2 * D), const, True),                            # [Wk^T|Wv^T] bf16
                _spec((1, 2 * D), const, True),                            # [bk|bv]
                _spec((D, D), const, True),                                # Wo^T   bf16
                _spec((1, D), const, True),                                # bo
            ],
            out_specs=pl.BlockSpec((None, tq, D), lambda b, q: (b, q, 0)),
            scratch_shapes=[
                pltpu.VMEM((D, S), jnp.bfloat16),    # K^T cache (lane-dense)
                pltpu.VMEM((S, D), jnp.bfloat16),    # V cache
                pltpu.VMEM((tq, D), jnp.bfloat16),   # merged per-head contexts
            ],
        ),
        compiler_params=pltpu.CompilerParams(
            dimension_semantics=("parallel", "arbitrary"),
            vmem_limit_bytes=vmem_limit),
        cost_estimate=pl.CostEstimate(flops=flops,
                                      transcendentals=transcendentals,
                                      bytes_accessed=bytes_accessed),
    )(x, x, mask, wq_t, bq_2d, wkv_t, bkv_2d, wo_t, bo_2d)


def _reference_mhsa(x, mask, params, n_heads):
    """Plain-JAX replica of the PyTorch forward (eval mode, dropout off)."""
    wq, bq, wk, bk, wv, bv, wo, bo = params
    B, S, D = x.shape
    d_k = D // n_heads

    def linear(inp, w, b):
        return inp @ w.T + b

    def split_heads(t):
        return jnp.transpose(t.reshape(B, S, n_heads, d_k), (0, 2, 1, 3))

    q = split_heads(linear(x, wq, bq))
    k = split_heads(linear(x, wk, bk))
    v = split_heads(linear(x, wv, bv))
    m = mask[:, None, :, :]                                     # (B,1,1,S)
    scores = jnp.einsum("bhqd,bhkd->bhqk", q, k) / math.sqrt(d_k)
    scores = jnp.where(m == 0, -1e9, scores)
    p = jax.nn.softmax(scores, axis=-1)
    p = jnp.where(m == 0, 0.0, p)
    ctx = jnp.einsum("bhqk,bhkd->bhqd", p, v)
    ctx = jnp.transpose(ctx, (0, 2, 1, 3)).reshape(B, S, D)
    return linear(ctx, wo, bo)


if __name__ == "__main__":
    B, S, D, H = 2, 8, 32, 4

    key = jax.random.PRNGKey(0)
    ks = jax.random.split(key, 9)

    x = jax.random.normal(ks[0], (B, S, D), dtype=jnp.float32)
    mask = jnp.ones((B, 1, S), dtype=jnp.float32)
    mask = mask.at[1, 0, S - 2:].set(0.0)       # mask last two keys of batch 1

    def make_linear(kw, kb):
        w = jax.random.normal(kw, (D, D), dtype=jnp.float32) / math.sqrt(D)
        b = jax.random.normal(kb, (D,), dtype=jnp.float32) * 0.1
        return w, b

    wq, bq = make_linear(ks[1], ks[2])
    wk, bk = make_linear(ks[3], ks[4])
    wv, bv = make_linear(ks[5], ks[6])
    wo, bo = make_linear(ks[7], ks[8])
    params = (wq, bq, wk, bk, wv, bv, wo, bo)

    out = multi_headed_self_attention(x, mask, params, n_heads=H)
    out = jax.block_until_ready(out)
    ref = _reference_mhsa(x, mask, params, H)

    assert out.shape == (B, S, D)
    # bf16 MXU operands + approx reciprocal -> small, bounded deviation from
    # the pure-f32 reference.
    max_err = float(jnp.max(jnp.abs(out - ref)))
    rel_err = float(jnp.linalg.norm(out - ref) / (jnp.linalg.norm(ref) + 1e-12))
    assert max_err < 2e-1 and rel_err < 4e-2, (
        f"mismatch vs reference: max_abs={max_err:.4e} rel_fro={rel_err:.4e}")

    print("KERNEL_OK")
</pallas_src>

<mosaic_0001>
module attributes {stable_mosaic.version = 11 : i64} {
  func.func @_mhsa_kernel(%arg0: i32, %arg1: i32, %arg2: memref<1x8x32xf32, #tpu.memory_space<vmem>>, %arg3: memref<1x8x32xf32, #tpu.memory_space<vmem>>, %arg4: memref<1x1x8xf32, #tpu.memory_space<vmem>>, %arg5: memref<32x32xbf16, #tpu.memory_space<vmem>>, %arg6: memref<1x32xf32, #tpu.memory_space<vmem>>, %arg7: memref<32x64xbf16, #tpu.memory_space<vmem>>, %arg8: memref<1x64xf32, #tpu.memory_space<vmem>>, %arg9: memref<32x32xbf16, #tpu.memory_space<vmem>>, %arg10: memref<1x32xf32, #tpu.memory_space<vmem>>, %arg11: memref<1x8x32xf32, #tpu.memory_space<vmem>>, %arg12: memref<32x8xbf16, #tpu.memory_space<vmem>>, %arg13: memref<8x32xbf16, #tpu.memory_space<vmem>>, %arg14: memref<8x32xbf16, #tpu.memory_space<vmem>>) attributes {dimension_semantics = [#tpu.dimension_semantics<parallel>, #tpu.dimension_semantics<arbitrary>], iteration_bounds = array<i64: 2, 1>, scalar_prefetch = 0 : i64, scratch_operands = 3 : i64, tpu.core_type = #tpu.core_type<tc>, window_params = [{transform_indices = @transform_0, window_bounds = array<i64: 1, 8, 32>}, {pipeline_mode = #tpu.pipeline_mode<synchronous>, transform_indices = @transform_1, window_bounds = array<i64: 1, 8, 32>}, {transform_indices = @transform_2, window_bounds = array<i64: 1, 1, 8>}, {pipeline_mode = #tpu.pipeline_mode<synchronous>, transform_indices = @transform_3, window_bounds = array<i64: 32, 32>}, {pipeline_mode = #tpu.pipeline_mode<synchronous>, transform_indices = @transform_4, window_bounds = array<i64: 1, 32>}, {pipeline_mode = #tpu.pipeline_mode<synchronous>, transform_indices = @transform_5, window_bounds = array<i64: 32, 64>}, {pipeline_mode = #tpu.pipeline_mode<synchronous>, transform_indices = @transform_6, window_bounds = array<i64: 1, 64>}, {pipeline_mode = #tpu.pipeline_mode<synchronous>, transform_indices = @transform_7, window_bounds = array<i64: 32, 32>}, {pipeline_mode = #tpu.pipeline_mode<synchronous>, transform_indices = @transform_8, window_bounds = array<i64: 1, 32>}, {transform_indices = @transform_9, window_bounds = array<i64: 1, 8, 32>}]} {
    %c0_i32 = arith.constant 0 : i32
    %0 = arith.cmpi eq, %arg1, %c0_i32 : i32
    %1 = arith.extui %0 : i1 to i32
    %c0_i32_0 = arith.constant 0 : i32
    %2 = arith.cmpi ne, %1, %c0_i32_0 : i32
    scf.if %2 {
      %c0_60 = arith.constant 0 : index
      %c0_61 = arith.constant 0 : index
      %c0_62 = arith.constant 0 : index
      %113 = vector.load %arg3[%c0_60, %c0_61, %c0_62] : memref<1x8x32xf32, #tpu.memory_space<vmem>>, vector<1x8x32xf32>
      %114 = vector.shape_cast %113 : vector<1x8x32xf32> to vector<8x32xf32>
      %115 = arith.truncf %114 : vector<8x32xf32> to vector<8x32xbf16>
      %c0_63 = arith.constant 0 : index
      %c0_64 = arith.constant 0 : index
      %116 = vector.load %arg7[%c0_63, %c0_64] : memref<32x64xbf16, #tpu.memory_space<vmem>>, vector<32x64xbf16>
      %cst_65 = arith.constant dense<0.000000e+00> : vector<8x64xf32>
      %117 = tpu.matmul %115, %116, %cst_65 {dimension_numbers = #tpu.dot_dimension_numbers<[1], [0], [0], [1], [0, 0, 1, 1], [], []>} : vector<8x32xbf16>, vector<32x64xbf16>, vector<8x64xf32> -> vector<8x64xf32>
      %c0_66 = arith.constant 0 : index
      %c0_67 = arith.constant 0 : index
      %118 = vector.load %arg8[%c0_66, %c0_67] : memref<1x64xf32, #tpu.memory_space<vmem>>, vector<1x64xf32>
      %119 = vector.broadcast %118 : vector<1x64xf32> to vector<8x64xf32>
      %120 = arith.addf %117, %119 : vector<8x64xf32>
      %121 = vector.extract_strided_slice %120 {offsets = [0, 0], sizes = [8, 32], strides = [1, 1]} : vector<8x64xf32> to vector<8x32xf32>
      %122 = tpu.transpose %121, [1, 0] : vector<8x32xf32> -> vector<32x8xf32>
      %123 = arith.truncf %122 : vector<32x8xf32> to vector<32x8xbf16>
      %c0_68 = arith.constant 0 : index
      %c0_69 = arith.constant 0 : index
      %124 = vector.load %arg12[%c0_68, %c0_69] : memref<32x8xbf16, #tpu.memory_space<vmem>>, vector<32x8xbf16>
      tpu.vector_store %arg12[%c0_68, %c0_69], %123 {strides = array<i32>} : memref<32x8xbf16, #tpu.memory_space<vmem>>, vector<32x8xbf16>,
      %125 = vector.extract_strided_slice %120 {offsets = [0, 32], sizes = [8, 32], strides = [1, 1]} : vector<8x64xf32> to vector<8x32xf32>
      %126 = arith.truncf %125 : vector<8x32xf32> to vector<8x32xbf16>
      %c0_70 = arith.constant 0 : index
      %c0_71 = arith.constant 0 : index
      %127 = vector.load %arg13[%c0_70, %c0_71] : memref<8x32xbf16, #tpu.memory_space<vmem>>, vector<8x32xbf16>
      tpu.vector_store %arg13[%c0_70, %c0_71], %126 {strides = array<i32>} : memref<8x32xbf16, #tpu.memory_space<vmem>>, vector<8x32xbf16>,
    } else {
    }
    %c0 = arith.constant 0 : index
    %c0_1 = arith.constant 0 : index
    %c0_2 = arith.constant 0 : index
    %3 = vector.load %arg2[%c0, %c0_1, %c0_2] : memref<1x8x32xf32, #tpu.memory_space<vmem>>, vector<1x8x32xf32>
    %4 = vector.shape_cast %3 : vector<1x8x32xf32> to vector<8x32xf32>
    %5 = arith.truncf %4 : vector<8x32xf32> to vector<8x32xbf16>
    %c0_3 = arith.constant 0 : index
    %c0_4 = arith.constant 0 : index
    %6 = vector.load %arg5[%c0_3, %c0_4] : memref<32x32xbf16, #tpu.memory_space<vmem>>, vector<32x32xbf16>
    %cst = arith.constant dense<0.000000e+00> : vector<8x32xf32>
    %7 = tpu.matmul %5, %6, %cst {dimension_numbers = #tpu.dot_dimension_numbers<[1], [0], [0], [1], [0, 0, 1, 1], [], []>} : vector<8x32xbf16>, vector<32x32xbf16>, vector<8x32xf32> -> vector<8x32xf32>
    %c0_5 = arith.constant 0 : index
    %c0_6 = arith.constant 0 : index
    %8 = vector.load %arg6[%c0_5, %c0_6] : memref<1x32xf32, #tpu.memory_space<vmem>>, vector<1x32xf32>
    %9 = vector.broadcast %8 : vector<1x32xf32> to vector<8x32xf32>
    %10 = arith.addf %7, %9 : vector<8x32xf32>
    %cst_7 = arith.constant 0.353553385 : f32
    %11 = vector.broadcast %cst_7 : f32 to vector<8x32xf32>
    %12 = arith.mulf %10, %11 : vector<8x32xf32>
    %13 = arith.truncf %12 : vector<8x32xf32> to vector<8x32xbf16>
    %c0_8 = arith.constant 0 : index
    %c0_9 = arith.constant 0 : index
    %c0_10 = arith.constant 0 : index
    %14 = vector.load %arg4[%c0_8, %c0_9, %c0_10] : memref<1x1x8xf32, #tpu.memory_space<vmem>>, vector<1x1x8xf32>
    %15 = vector.shape_cast %14 : vector<1x1x8xf32> to vector<1x8xf32>
    %cst_11 = arith.constant 1.000000e+00 : f32
    %16 = vector.broadcast %cst_11 : f32 to vector<1x8xf32>
    %17 = arith.subf %15, %16 : vector<1x8xf32>
    %cst_12 = arith.constant 1.000000e+09 : f32
    %18 = vector.broadcast %cst_12 : f32 to vector<1x8xf32>
    %19 = arith.mulf %17, %18 : vector<1x8xf32>
    %20 = vector.shape_cast %19 : vector<1x8xf32> to vector<1x8xf32>
    %21 = vector.broadcast %20 : vector<1x8xf32> to vector<8x8xf32>
    %22 = vector.shape_cast %15 : vector<1x8xf32> to vector<1x8xf32>
    %23 = vector.broadcast %22 : vector<1x8xf32> to vector<8x8xf32>
    %24 = vector.extract_strided_slice %13 {offsets = [0, 0], sizes = [8, 8], strides = [1, 1]} : vector<8x32xbf16> to vector<8x8xbf16>
    %c0_13 = arith.constant 0 : index
    %c0_14 = arith.constant 0 : index
    %25 = vector.load %arg12[%c0_13, %c0_14] : memref<32x8xbf16, #tpu.memory_space<vmem>>, vector<8x8xbf16>
    %cst_15 = arith.constant dense<0.000000e+00> : vector<8x8xf32>
    %26 = tpu.matmul %24, %25, %cst_15 {dimension_numbers = #tpu.dot_dimension_numbers<[1], [0], [0], [1], [0, 0, 1, 1], [], []>} : vector<8x8xbf16>, vector<8x8xbf16>, vector<8x8xf32> -> vector<8x8xf32>
    %27 = arith.addf %26, %21 : vector<8x8xf32>
    %cst_16 = arith.constant dense<0xFF800000> : vector<8xf32>
    %28 = vector.multi_reduction <maximumf>, %27, %cst_16 [1] : vector<8x8xf32> to vector<8xf32>
    %29 = vector.shape_cast %28 : vector<8xf32> to vector<8x1xf32>
    %30 = vector.broadcast %29 : vector<8x1xf32> to vector<8x8xf32>
    %31 = arith.subf %27, %30 : vector<8x8xf32>
    %32 = math.exp %31 : vector<8x8xf32>
    %cst_17 = arith.constant dense<0.000000e+00> : vector<8xf32>
    %33 = vector.multi_reduction <add>, %32, %cst_17 [1] : vector<8x8xf32> to vector<8xf32>
    %34 = vector.shape_cast %33 : vector<8xf32> to vector<8x1xf32>
    %35 = tpu.reciprocal %34 {approx = true} : vector<8x1xf32> -> vector<8x1xf32>
    %36 = vector.broadcast %35 : vector<8x1xf32> to vector<8x8xf32>
    %37 = arith.mulf %32, %36 : vector<8x8xf32>
    %38 = arith.mulf %37, %23 : vector<8x8xf32>
    %39 = arith.truncf %38 : vector<8x8xf32> to vector<8x8xbf16>
    %c0_18 = arith.constant 0 : index
    %c0_19 = arith.constant 0 : index
    %40 = vector.load %arg13[%c0_18, %c0_19] : memref<8x32xbf16, #tpu.memory_space<vmem>>, vector<8x8xbf16>
    %cst_20 = arith.constant dense<0.000000e+00> : vector<8x8xf32>
    %41 = tpu.matmul %39, %40, %cst_20 {dimension_numbers = #tpu.dot_dimension_numbers<[1], [0], [0], [1], [0, 0, 1, 1], [], []>} : vector<8x8xbf16>, vector<8x8xbf16>, vector<8x8xf32> -> vector<8x8xf32>
    %42 = arith.truncf %41 : vector<8x8xf32> to vector<8x8xbf16>
    %c0_21 = arith.constant 0 : index
    %c0_22 = arith.constant 0 : index
    %43 = vector.load %arg14[%c0_21, %c0_22] : memref<8x32xbf16, #tpu.memory_space<vmem>>, vector<8x8xbf16>
    tpu.vector_store %arg14[%c0_21, %c0_22], %42 {strides = array<i32>} : memref<8x32xbf16, #tpu.memory_space<vmem>>, vector<8x8xbf16>,
    %44 = vector.extract_strided_slice %13 {offsets = [0, 8], sizes = [8, 8], strides = [1, 1]} : vector<8x32xbf16> to vector<8x8xbf16>
    %c8 = arith.constant 8 : index
    %c0_23 = arith.constant 0 : index
    %45 = vector.load %arg12[%c8, %c0_23] : memref<32x8xbf16, #tpu.memory_space<vmem>>, vector<8x8xbf16>
    %cst_24 = arith.constant dense<0.000000e+00> : vector<8x8xf32>
    %46 = tpu.matmul %44, %45, %cst_24 {dimension_numbers = #tpu.dot_dimension_numbers<[1], [0], [0], [1], [0, 0, 1, 1], [], []>} : vector<8x8xbf16>, vector<8x8xbf16>, vector<8x8xf32> -> vector<8x8xf32>
    %47 = arith.addf %46, %21 : vector<8x8xf32>
    %cst_25 = arith.constant dense<0xFF800000> : vector<8xf32>
    %48 = vector.multi_reduction <maximumf>, %47, %cst_25 [1] : vector<8x8xf32> to vector<8xf32>
    %49 = vector.shape_cast %48 : vector<8xf32> to vector<8x1xf32>
    %50 = vector.broadcast %49 : vector<8x1xf32> to vector<8x8xf32>
    %51 = arith.subf %47, %50 : vector<8x8xf32>
    %52 = math.exp %51 : vector<8x8xf32>
    %cst_26 = arith.constant dense<0.000000e+00> : vector<8xf32>
    %53 = vector.multi_reduction <add>, %52, %cst_26 [1] : vector<8x8xf32> to vector<8xf32>
    %54 = vector.shape_cast %53 : vector<8xf32> to vector<8x1xf32>
    %55 = tpu.reciprocal %54 {approx = true} : vector<8x1xf32> -> vector<8x1xf32>
    %56 = vector.broadcast %55 : vector<8x1xf32> to vector<8x8xf32>
    %57 = arith.mulf %52, %56 : vector<8x8xf32>
    %58 = arith.mulf %57, %23 : vector<8x8xf32>
    %59 = arith.truncf %58 : vector<8x8xf32> to vector<8x8xbf16>
    %c0_27 = arith.constant 0 : index
    %c8_28 = arith.constant 8 : index
    %60 = vector.load %arg13[%c0_27, %c8_28] : memref<8x32xbf16, #tpu.memory_space<vmem>>, vector<8x8xbf16>
    %cst_29 = arith.constant dense<0.000000e+00> : vector<8x8xf32>
    %61 = tpu.matmul %59, %60, %cst_29 {dimension_numbers = #tpu.dot_dimension_numbers<[1], [0], [0], [1], [0, 0, 1, 1], [], []>} : vector<8x8xbf16>, vector<8x8xbf16>, vector<8x8xf32> -> vector<8x8xf32>
    %62 = arith.truncf %61 : vector<8x8xf32> to vector<8x8xbf16>
    %c0_30 = arith.constant 0 : index
    %c8_31 = arith.constant 8 : index
    %63 = vector.load %arg14[%c0_30, %c8_31] : memref<8x32xbf16, #tpu.memory_space<vmem>>, vector<8x8xbf16>
    tpu.vector_store %arg14[%c0_30, %c8_31], %62 {strides = array<i32>} : memref<8x32xbf16, #tpu.memory_space<vmem>>, vector<8x8xbf16>,
    %64 = vector.extract_strided_slice %13 {offsets = [0, 16], sizes = [8, 8], strides = [1, 1]} : vector<8x32xbf16> to vector<8x8xbf16>
    %c16 = arith.constant 16 : index
    %c0_32 = arith.constant 0 : index
    %65 = vector.load %arg12[%c16, %c0_32] : memref<32x8xbf16, #tpu.memory_space<vmem>>, vector<8x8xbf16>
    %cst_33 = arith.constant dense<0.000000e+00> : vector<8x8xf32>
    %66 = tpu.matmul %64, %65, %cst_33 {dimension_numbers = #tpu.dot_dimension_numbers<[1], [0], [0], [1], [0, 0, 1, 1], [], []>} : vector<8x8xbf16>, vector<8x8xbf16>, vector<8x8xf32> -> vector<8x8xf32>
    %67 = arith.addf %66, %21 : vector<8x8xf32>
    %cst_34 = arith.constant dense<0xFF800000> : vector<8xf32>
    %68 = vector.multi_reduction <maximumf>, %67, %cst_34 [1] : vector<8x8xf32> to vector<8xf32>
    %69 = vector.shape_cast %68 : vector<8xf32> to vector<8x1xf32>
    %70 = vector.broadcast %69 : vector<8x1xf32> to vector<8x8xf32>
    %71 = arith.subf %67, %70 : vector<8x8xf32>
    %72 = math.exp %71 : vector<8x8xf32>
    %cst_35 = arith.constant dense<0.000000e+00> : vector<8xf32>
    %73 = vector.multi_reduction <add>, %72, %cst_35 [1] : vector<8x8xf32> to vector<8xf32>
    %74 = vector.shape_cast %73 : vector<8xf32> to vector<8x1xf32>
    %75 = tpu.reciprocal %74 {approx = true} : vector<8x1xf32> -> vector<8x1xf32>
    %76 = vector.broadcast %75 : vector<8x1xf32> to vector<8x8xf32>
    %77 = arith.mulf %72, %76 : vector<8x8xf32>
    %78 = arith.mulf %77, %23 : vector<8x8xf32>
    %79 = arith.truncf %78 : vector<8x8xf32> to vector<8x8xbf16>
    %c0_36 = arith.constant 0 : index
    %c16_37 = arith.constant 16 : index
    %80 = vector.load %arg13[%c0_36, %c16_37] : memref<8x32xbf16, #tpu.memory_space<vmem>>, vector<8x8xbf16>
    %cst_38 = arith.constant dense<0.000000e+00> : vector<8x8xf32>
    %81 = tpu.matmul %79, %80, %cst_38 {dimension_numbers = #tpu.dot_dimension_numbers<[1], [0], [0], [1], [0, 0, 1, 1], [], []>} : vector<8x8xbf16>, vector<8x8xbf16>, vector<8x8xf32> -> vector<8x8xf32>
    %82 = arith.truncf %81 : vector<8x8xf32> to vector<8x8xbf16>
    %c0_39 = arith.constant 0 : index
    %c16_40 = arith.constant 16 : index
    %83 = vector.load %arg14[%c0_39, %c16_40] : memref<8x32xbf16, #tpu.memory_space<vmem>>, vector<8x8xbf16>
    tpu.vector_store %arg14[%c0_39, %c16_40], %82 {strides = array<i32>} : memref<8x32xbf16, #tpu.memory_space<vmem>>, vector<8x8xbf16>,
    %84 = vector.extract_strided_slice %13 {offsets = [0, 24], sizes = [8, 8], strides = [1, 1]} : vector<8x32xbf16> to vector<8x8xbf16>
    %c24 = arith.constant 24 : index
    %c0_41 = arith.constant 0 : index
    %85 = vector.load %arg12[%c24, %c0_41] : memref<32x8xbf16, #tpu.memory_space<vmem>>, vector<8x8xbf16>
    %cst_42 = arith.constant dense<0.000000e+00> : vector<8x8xf32>
    %86 = tpu.matmul %84, %85, %cst_42 {dimension_numbers = #tpu.dot_dimension_numbers<[1], [0], [0], [1], [0, 0, 1, 1], [], []>} : vector<8x8xbf16>, vector<8x8xbf16>, vector<8x8xf32> -> vector<8x8xf32>
    %87 = arith.addf %86, %21 : vector<8x8xf32>
    %cst_43 = arith.constant dense<0xFF800000> : vector<8xf32>
    %88 = vector.multi_reduction <maximumf>, %87, %cst_43 [1] : vector<8x8xf32> to vector<8xf32>
    %89 = vector.shape_cast %88 : vector<8xf32> to vector<8x1xf32>
    %90 = vector.broadcast %89 : vector<8x1xf32> to vector<8x8xf32>
    %91 = arith.subf %87, %90 : vector<8x8xf32>
    %92 = math.exp %91 : vector<8x8xf32>
    %cst_44 = arith.constant dense<0.000000e+00> : vector<8xf32>
    %93 = vector.multi_reduction <add>, %92, %cst_44 [1] : vector<8x8xf32> to vector<8xf32>
    %94 = vector.shape_cast %93 : vector<8xf32> to vector<8x1xf32>
    %95 = tpu.reciprocal %94 {approx = true} : vector<8x1xf32> -> vector<8x1xf32>
    %96 = vector.broadcast %95 : vector<8x1xf32> to vector<8x8xf32>
    %97 = arith.mulf %92, %96 : vector<8x8xf32>
    %98 = arith.mulf %97, %23 : vector<8x8xf32>
    %99 = arith.truncf %98 : vector<8x8xf32> to vector<8x8xbf16>
    %c0_45 = arith.constant 0 : index
    %c24_46 = arith.constant 24 : index
    %100 = vector.load %arg13[%c0_45, %c24_46] : memref<8x32xbf16, #tpu.memory_space<vmem>>, vector<8x8xbf16>
    %cst_47 = arith.constant dense<0.000000e+00> : vector<8x8xf32>
    %101 = tpu.matmul %99, %100, %cst_47 {dimension_numbers = #tpu.dot_dimension_numbers<[1], [0], [0], [1], [0, 0, 1, 1], [], []>} : vector<8x8xbf16>, vector<8x8xbf16>, vector<8x8xf32> -> vector<8x8xf32>
    %102 = arith.truncf %101 : vector<8x8xf32> to vector<8x8xbf16>
    %c0_48 = arith.constant 0 : index
    %c24_49 = arith.constant 24 : index
    %103 = vector.load %arg14[%c0_48, %c24_49] : memref<8x32xbf16, #tpu.memory_space<vmem>>, vector<8x8xbf16>
    tpu.vector_store %arg14[%c0_48, %c24_49], %102 {strides = array<i32>} : memref<8x32xbf16, #tpu.memory_space<vmem>>, vector<8x8xbf16>,
    %c0_50 = arith.constant 0 : index
    %c0_51 = arith.constant 0 : index
    %104 = vector.load %arg14[%c0_50, %c0_51] : memref<8x32xbf16, #tpu.memory_space<vmem>>, vector<8x32xbf16>
    %c0_52 = arith.constant 0 : index
    %c0_53 = arith.constant 0 : index
    %105 = vector.load %arg9[%c0_52, %c0_53] : memref<32x32xbf16, #tpu.memory_space<vmem>>, vector<32x32xbf16>
    %cst_54 = arith.constant dense<0.000000e+00> : vector<8x32xf32>
    %106 = tpu.matmul %104, %105, %cst_54 {dimension_numbers = #tpu.dot_dimension_numbers<[1], [0], [0], [1], [0, 0, 1, 1], [], []>} : vector<8x32xbf16>, vector<32x32xbf16>, vector<8x32xf32> -> vector<8x32xf32>
    %c0_55 = arith.constant 0 : index
    %c0_56 = arith.constant 0 : index
    %107 = vector.load %arg10[%c0_55, %c0_56] : memref<1x32xf32, #tpu.memory_space<vmem>>, vector<1x32xf32>
    %108 = vector.broadcast %107 : vector<1x32xf32> to vector<8x32xf32>
    %109 = arith.addf %106, %108 : vector<8x32xf32>
    %c0_57 = arith.constant 0 : index
    %c0_58 = arith.constant 0 : index
    %c0_59 = arith.constant 0 : index
    %110 = vector.load %arg11[%c0_57, %c0_58, %c0_59] : memref<1x8x32xf32, #tpu.memory_space<vmem>>, vector<1x8x32xf32>
    %111 = vector.shape_cast %110 : vector<1x8x32xf32> to vector<8x32xf32>
    %112 = vector.shape_cast %109 : vector<8x32xf32> to vector<1x8x32xf32>
    tpu.vector_store %arg11[%c0_57, %c0_58, %c0_59], %112 {strides = array<i32>} : memref<1x8x32xf32, #tpu.memory_space<vmem>>, vector<1x8x32xf32>,
    return
  }
  func.func @transform_0(%arg0: i32, %arg1: i32) -> (i32, i32, i32) {
    %c0_i32 = arith.constant 0 : i32
    %c0_i32_0 = arith.constant 0 : i32
    return %arg0, %arg1, %c0_i32 : i32, i32, i32
  }
  func.func @transform_1(%arg0: i32, %arg1: i32) -> (i32, i32, i32) {
    %c0_i32 = arith.constant 0 : i32
    %c0_i32_0 = arith.constant 0 : i32
    %c0_i32_1 = arith.constant 0 : i32
    return %arg0, %c0_i32, %c0_i32_0 : i32, i32, i32
  }
  func.func @transform_2(%arg0: i32, %arg1: i32) -> (i32, i32, i32) {
    %c0_i32 = arith.constant 0 : i32
    %c0_i32_0 = arith.constant 0 : i32
    %c0_i32_1 = arith.constant 0 : i32
    return %arg0, %c0_i32, %c0_i32_0 : i32, i32, i32
  }
  func.func @transform_3(%arg0: i32, %arg1: i32) -> (i32, i32) {
    %c0_i32 = arith.constant 0 : i32
    %c0_i32_0 = arith.constant 0 : i32
    %c0_i32_1 = arith.constant 0 : i32
    return %c0_i32, %c0_i32_0 : i32, i32
  }
  func.func @transform_4(%arg0: i32, %arg1: i32) -> (i32, i32) {
    %c0_i32 = arith.constant 0 : i32
    %c0_i32_0 = arith.constant 0 : i32
    %c0_i32_1 = arith.constant 0 : i32
    return %c0_i32, %c0_i32_0 : i32, i32
  }
  func.func @transform_5(%arg0: i32, %arg1: i32) -> (i32, i32) {
    %c0_i32 = arith.constant 0 : i32
    %c0_i32_0 = arith.constant 0 : i32
    %c0_i32_1 = arith.constant 0 : i32
    return %c0_i32, %c0_i32_0 : i32, i32
  }
  func.func @transform_6(%arg0: i32, %arg1: i32) -> (i32, i32) {
    %c0_i32 = arith.constant 0 : i32
    %c0_i32_0 = arith.constant 0 : i32
    %c0_i32_1 = arith.constant 0 : i32
    return %c0_i32, %c0_i32_0 : i32, i32
  }
  func.func @transform_7(%arg0: i32, %arg1: i32) -> (i32, i32) {
    %c0_i32 = arith.constant 0 : i32
    %c0_i32_0 = arith.constant 0 : i32
    %c0_i32_1 = arith.constant 0 : i32
    return %c0_i32, %c0_i32_0 : i32, i32
  }
  func.func @transform_8(%arg0: i32, %arg1: i32) -> (i32, i32) {
    %c0_i32 = arith.constant 0 : i32
    %c0_i32_0 = arith.constant 0 : i32
    %c0_i32_1 = arith.constant 0 : i32
    return %c0_i32, %c0_i32_0 : i32, i32
  }
  func.func @transform_9(%arg0: i32, %arg1: i32) -> (i32, i32, i32) {
    %c0_i32 = arith.constant 0 : i32
    %c0_i32_0 = arith.constant 0 : i32
    return %arg0, %arg1, %c0_i32 : i32, i32, i32
  }
}

</mosaic_0001>

<llo_original>
// kernel: tpu_custom_call.1
$region0: #{tpu_custom_call.1}
  #allocation0 [shape = 'u32[]', space=smem, size = 0x4, offset = 0x4, fixed_abs, tag = 'smem constant byte address 0x4 - core index']
  #allocation1 [shape = 'u32[144,128]{1,0:T(1,128)}', space=vmem, size = 0x12000, scoped, tag = 'internal scratch']
  #allocation2 [shape = 'bf16[32,8]{1,0:T(16,128)(2,1)}', space=vmem, size = 0x2000, scoped, tag = 'scratch operand']
  #allocation3 [shape = 'bf16[8,32]{1,0:T(8,128)(2,1)}', space=vmem, size = 0x800, scoped, tag = 'scratch operand']
  #allocation4 [shape = 'bf16[8,32]{1,0:T(8,128)(2,1)}', space=vmem, size = 0x800, scoped, tag = 'scratch operand']
  %s0 = inlined_call_operand.hbm [shape: f32[2,8,32], index: 0, kind: input, shape index: {}]
  %s1 = inlined_call_operand.hbm [shape: f32[2,8,32], index: 1, kind: input, shape index: {}]
  %s2 = inlined_call_operand.vmem [shape: f32[2,1,8], index: 2, kind: input, shape index: {}]
  %s3 = inlined_call_operand.hbm [shape: bf16[32,32], index: 3, kind: input, shape index: {}]
  %s4 = inlined_call_operand.hbm [shape: f32[1,32], index: 4, kind: input, shape index: {}]
  %s5 = inlined_call_operand.vmem [shape: bf16[32,64], index: 5, kind: input, shape index: {}]
  %s6 = inlined_call_operand.vmem [shape: f32[1,64], index: 6, kind: input, shape index: {}]
  %s7 = inlined_call_operand.hbm [shape: bf16[32,32], index: 7, kind: input, shape index: {}]
  %s8 = inlined_call_operand.vmem [shape: f32[1,32], index: 8, kind: input, shape index: {}]
  %s9 = inlined_call_operand.hbm [shape: f32[2,8,32], index: 9, kind: output, shape index: {}]
  %s10 = sld [smem:[#allocation0]]
  $region93: #{tpu_custom_call.1} parent=0
    _
  %s12 = ssub.s32 1, %s10
  %s13 = scalar_select 0, %s12, %s10
  $region1: #{tpu_custom_call.1} parent=0
    #allocation5 [shape = 'u8[8192]{0}', space=vmem, size = 0x2000, scoped, tag = 'input window, operand 0']
    #allocation6 [shape = 's32[2]{0}', space=sflag, size = 0x8, scoped, tag = 'scoped memory for tpu_custom_call.1']
    #allocation7 [shape = 's32[2]{0}', space=sflag, size = 0x8, scoped, tag = 'scoped memory for tpu_custom_call.1']
    #allocation8 [shape = 'u8[4096]{0}', space=vmem, size = 0x1000, scoped, tag = 'input window, operand 1, single buffered']
    #allocation9 [shape = 's32[1]{0}', space=sflag, size = 0x4, scoped, tag = 'scoped memory for tpu_custom_call.1']
    #allocation10 [shape = 'u8[8192]{0}', space=vmem, size = 0x2000, scoped, tag = 'input window, operand 3, single buffered']
    #allocation11 [shape = 'u8[512]{0}', space=vmem, size = 0x400, scoped, tag = 'input window, operand 4, single buffered']
    #allocation12 [shape = 's32[1]{0}', space=sflag, size = 0x4, scoped, tag = 'scoped memory for tpu_custom_call.1']
    #allocation13 [shape = 'u8[8192]{0}', space=vmem, size = 0x2000, scoped, tag = 'input window, operand 7, single buffered']
    #allocation14 [shape = 'u8[8192]{0}', space=vmem, size = 0x2000, scoped, tag = 'output window, operand 0']
    %14 = vsyncpa [#allocation6], 0
    %s15 = scalar_lea.sflag [#allocation6], 1
    %16 = vsyncpa %s15, 0
    %17 = vsyncpa [#allocation9], 0
    %18 = vsyncpa [#allocation12], 0
    %19 = vsyncpa [#allocation7], 0
    %s20 = scalar_lea.sflag [#allocation7], 1
    %21 = vsyncpa %s20, 0
    loop: start=0, step=1, limit=4
    $region2: #{tpu_custom_call.1} parent=1 // loop_pre_header
      _
    $region3: #{tpu_custom_call.1} parent=1 // loop_header
      %s23 = sphi 0, %s27
      %p24 = scmp.ge.s32.totalorder %s23, 4
      %s30 = sphi 0, %s42
      %s31 = sphi 0, %s38
      %s32 = sphi 0, %s30
      %s33 = sphi 0, %s31
      %s34 = sphi 0, %s32
      %s35 = sphi 0, %s33
      %s47 = sphi 0, %s49
      %s50 = sphi 0, %s47
      %s51 = sphi 0, %s50
      %s67 = sphi 0, %s51
      %s73 = sphi 0, %s75
      %s76 = sphi 0, %s73
      %s77 = sphi 0, %s76
      %s93 = sphi 0, %s77
      %s99 = sphi 0, %s101
      %s102 = sphi 0, %s99
      %s103 = sphi 0, %s102
      %s119 = sphi 0, %s103
      %s123 = sphi 0, %s123
      %s125 = sphi 0, %s123
      %s126 = sphi 0, %s125
      %s140 = sphi 0, %s126
      %s144 = sphi 0, %s144
      %s146 = sphi 0, %s144
      %s147 = sphi 0, %s146
      %s161 = sphi 0, %s147
      %s165 = sphi 0, %s165
      %s167 = sphi 0, %s165
      %s168 = sphi 0, %s167
      %s182 = sphi 0, %s168
      %s186 = sphi 0, %s186
      %s188 = sphi 0, %s186
      %s189 = sphi 0, %s188
      %s203 = sphi 0, %s189
      %s207 = sphi 0, %s207
      %s209 = sphi 0, %s207
      %s210 = sphi 0, %s209
      %s224 = sphi 0, %s210
      %s228 = sphi 0, %s228
      %s230 = sphi 0, %s228
      %s231 = sphi 0, %s230
      %s245 = sphi 0, %s231
      %s253 = sphi 0, %s255
      %s256 = sphi 0, %s253
      %s257 = sphi 0, %s256
      %s273 = sphi 0, %s257
    $region4: #{tpu_custom_call.1} parent=1 // loop_header_branch
      %26 = sbr.rel (%p24) target = $region8
    $region5: #{tpu_custom_call.1} parent=1 // loop_body
      %s28 = ssub.s32 %s23, 1
      %s29 = ssub.s32 %s23, 2
      %s36 = sadd.s32 1, %s31
      %p37 = scmp.ge.s32.totalorder %s36, 1
      %s38 = scalar_select %p37, 0, %s36
      %s39 = sadd.s32 1, %s30
      %s40 = scalar_select %p37, %s39, %s30
      %p41 = scmp.ge.s32.totalorder %s40, 2
      %s42 = scalar_select %p41, 0, %s40
      %s43 = ssub.s32 %s30, %s42
      %s44 = ssub.s32 %s31, %s38
      %s45 = sor.u32 %s43, %s44
      %p46 = scmp.eq.s32.totalorder %s45, 0
      %s48 = sadd.s32 %s47, 1
      %s49 = scalar_select %p46, %s47, %s48
      %p52 = pneg %p46
      %p53 = scmp.eq.s32.totalorder %s23, 1
      %p54 = por %p52, %p53
      %p55 = scmp.ne.s32.totalorder %s47, %s50
      %p56 = scmp.eq.s32.totalorder %s23, 0
      %p57 = por %p55, %p56
      %p58 = scmp.ne.s32.totalorder %s47, %s50
      %p59 = scmp.eq.s32.totalorder %s28, 1
      %p60 = por %p58, %p59
      %p61 = scmp.ne.s32.totalorder %s50, %s51
      %p62 = scmp.eq.s32.totalorder %s28, 0
      %p63 = por %p61, %p62
      %p64 = scmp.ne.s32.totalorder %s50, %s51
      %p65 = scmp.eq.s32.totalorder %s29, 1
      %p66 = por %p64, %p65
      %p68 = scmp.ne.s32.totalorder %s51, %s67
      %p69 = scmp.eq.s32.totalorder %s29, 0
      %p70 = por %p68, %p69
      %s71 = ssub.s32 %s30, %s42
      %p72 = scmp.eq.s32.totalorder %s71, 0
      %s74 = sadd.s32 %s73, 1
      %s75 = scalar_select %p72, %s73, %s74
      %p78 = pneg %p72
      %p79 = scmp.eq.s32.totalorder %s23, 1
      %p80 = por %p78, %p79
      %p81 = scmp.ne.s32.totalorder %s73, %s76
      %p82 = scmp.eq.s32.totalorder %s23, 0
      %p83 = por %p81, %p82
      %p84 = scmp.ne.s32.totalorder %s73, %s76
      %p85 = scmp.eq.s32.totalorder %s28, 1
      %p86 = por %p84, %p85
      %p87 = scmp.ne.s32.totalorder %s76, %s77
      %p88 = scmp.eq.s32.totalorder %s28, 0
      %p89 = por %p87, %p88
      %p90 = scmp.ne.s32.totalorder %s76, %s77
      %p91 = scmp.eq.s32.totalorder %s29, 1
      %p92 = por %p90, %p91
      %p94 = scmp.ne.s32.totalorder %s77, %s93
      %p95 = scmp.eq.s32.totalorder %s29, 0
      %p96 = por %p94, %p95
      %s97 = ssub.s32 %s30, %s42
      %p98 = scmp.eq.s32.totalorder %s97, 0
      %s100 = sadd.s32 %s99, 1
      %s101 = scalar_select %p98, %s99, %s100
      %p104 = pneg %p98
      %p105 = scmp.eq.s32.totalorder %s23, 1
      %p106 = por %p104, %p105
      %p107 = scmp.ne.s32.totalorder %s99, %s102
      %p108 = scmp.eq.s32.totalorder %s23, 0
      %p109 = por %p107, %p108
      %p110 = scmp.ne.s32.totalorder %s99, %s102
      %p111 = scmp.eq.s32.totalorder %s28, 1
      %p112 = por %p110, %p111
      %p113 = scmp.ne.s32.totalorder %s102, %s103
      %p114 = scmp.eq.s32.totalorder %s28, 0
      %p115 = por %p113, %p114
      %p116 = scmp.ne.s32.totalorder %s102, %s103
      %p117 = scmp.eq.s32.totalorder %s29, 1
      %p118 = por %p116, %p117
      %p120 = scmp.ne.s32.totalorder %s103, %s119
      %p121 = scmp.eq.s32.totalorder %s29, 0
      %p122 = por %p120, %p121
      %s124 = sadd.s32 %s123, 1
      %p127 = scmp.eq.s32.totalorder %s23, 1
      %p128 = scmp.ne.s32.totalorder %s123, %s125
      %p129 = scmp.eq.s32.totalorder %s23, 0
      %p130 = por %p128, %p129
      %p131 = scmp.ne.s32.totalorder %s123, %s125
      %p132 = scmp.eq.s32.totalorder %s28, 1
      %p133 = por %p131, %p132
      %p134 = scmp.ne.s32.totalorder %s125, %s126
      %p135 = scmp.eq.s32.totalorder %s28, 0
      %p136 = por %p134, %p135
      %p137 = scmp.ne.s32.totalorder %s125, %s126
      %p138 = scmp.eq.s32.totalorder %s29, 1
      %p139 = por %p137, %p138
      %p141 = scmp.ne.s32.totalorder %s126, %s140
      %p142 = scmp.eq.s32.totalorder %s29, 0
      %p143 = por %p141, %p142
      %s145 = sadd.s32 %s144, 1
      %p148 = scmp.eq.s32.totalorder %s23, 1
      %p149 = scmp.ne.s32.totalorder %s144, %s146
      %p150 = scmp.eq.s32.totalorder %s23, 0
      %p151 = por %p149, %p150
      %p152 = scmp.ne.s32.totalorder %s144, %s146
      %p153 = scmp.eq.s32.totalorder %s28, 1
      %p154 = por %p152, %p153
      %p155 = scmp.ne.s32.totalorder %s146, %s147
      %p156 = scmp.eq.s32.totalorder %s28, 0
      %p157 = por %p155, %p156
      %p158 = scmp.ne.s32.totalorder %s146, %s147
      %p159 = scmp.eq.s32.totalorder %s29, 1
      %p160 = por %p158, %p159
      %p162 = scmp.ne.s32.totalorder %s147, %s161
      %p163 = scmp.eq.s32.totalorder %s29, 0
      %p164 = por %p162, %p163
      %s166 = sadd.s32 %s165, 1
      %p169 = scmp.eq.s32.totalorder %s23, 1
      %p170 = scmp.ne.s32.totalorder %s165, %s167
      %p171 = scmp.eq.s32.totalorder %s23, 0
      %p172 = por %p170, %p171
      %p173 = scmp.ne.s32.totalorder %s165, %s167
      %p174 = scmp.eq.s32.totalorder %s28, 1
      %p175 = por %p173, %p174
      %p176 = scmp.ne.s32.totalorder %s167, %s168
      %p177 = scmp.eq.s32.totalorder %s28, 0
      %p178 = por %p176, %p177
      %p179 = scmp.ne.s32.totalorder %s167, %s168
      %p180 = scmp.eq.s32.totalorder %s29, 1
      %p181 = por %p179, %p180
      %p183 = scmp.ne.s32.totalorder %s168, %s182
      %p184 = scmp.eq.s32.totalorder %s29, 0
      %p185 = por %p183, %p184
      %s187 = sadd.s32 %s186, 1
      %p190 = scmp.eq.s32.totalorder %s23, 1
      %p191 = scmp.ne.s32.totalorder %s186, %s188
      %p192 = scmp.eq.s32.totalorder %s23, 0
      %p193 = por %p191, %p192
      %p194 = scmp.ne.s32.totalorder %s186, %s188
      %p195 = scmp.eq.s32.totalorder %s28, 1
      %p196 = por %p194, %p195
      %p197 = scmp.ne.s32.totalorder %s188, %s189
      %p198 = scmp.eq.s32.totalorder %s28, 0
      %p199 = por %p197, %p198
      %p200 = scmp.ne.s32.totalorder %s188, %s189
      %p201 = scmp.eq.s32.totalorder %s29, 1
      %p202 = por %p200, %p201
      %p204 = scmp.ne.s32.totalorder %s189, %s203
      %p205 = scmp.eq.s32.totalorder %s29, 0
      %p206 = por %p204, %p205
      %s208 = sadd.s32 %s207, 1
      %p211 = scmp.eq.s32.totalorder %s23, 1
      %p212 = scmp.ne.s32.totalorder %s207, %s209
      %p213 = scmp.eq.s32.totalorder %s23, 0
      %p214 = por %p212, %p213
      %p215 = scmp.ne.s32.totalorder %s207, %s209
      %p216 = scmp.eq.s32.totalorder %s28, 1
      %p217 = por %p215, %p216
      %p218 = scmp.ne.s32.totalorder %s209, %s210
      %p219 = scmp.eq.s32.totalorder %s28, 0
      %p220 = por %p218, %p219
      %p221 = scmp.ne.s32.totalorder %s209, %s210
      %p222 = scmp.eq.s32.totalorder %s29, 1
      %p223 = por %p221, %p222
      %p225 = scmp.ne.s32.totalorder %s210, %s224
      %p226 = scmp.eq.s32.totalorder %s29, 0
      %p227 = por %p225, %p226
      %s229 = sadd.s32 %s228, 1
      %p232 = scmp.eq.s32.totalorder %s23, 1
      %p233 = scmp.ne.s32.totalorder %s228, %s230
      %p234 = scmp.eq.s32.totalorder %s23, 0
      %p235 = por %p233, %p234
      %p236 = scmp.ne.s32.totalorder %s228, %s230
      %p237 = scmp.eq.s32.totalorder %s28, 1
      %p238 = por %p236, %p237
      %p239 = scmp.ne.s32.totalorder %s230, %s231
      %p240 = scmp.eq.s32.totalorder %s28, 0
      %p241 = por %p239, %p240
      %p242 = scmp.ne.s32.totalorder %s230, %s231
      %p243 = scmp.eq.s32.totalorder %s29, 1
      %p244 = por %p242, %p243
      %p246 = scmp.ne.s32.totalorder %s231, %s245
      %p247 = scmp.eq.s32.totalorder %s29, 0
      %p248 = por %p246, %p247
      %s249 = ssub.s32 %s30, %s42
      %s250 = ssub.s32 %s31, %s38
      %s251 = sor.u32 %s249, %s250
      %p252 = scmp.eq.s32.totalorder %s251, 0
      %s254 = sadd.s32 %s253, 1
      %s255 = scalar_select %p252, %s253, %s254
      %p258 = pneg %p252
      %p259 = scmp.eq.s32.totalorder %s23, 1
      %p260 = por %p258, %p259
      %p261 = scmp.ne.s32.totalorder %s253, %s256
      %p262 = scmp.eq.s32.totalorder %s23, 0
      %p263 = por %p261, %p262
      %p264 = scmp.ne.s32.totalorder %s253, %s256
      %p265 = scmp.eq.s32.totalorder %s28, 1
      %p266 = por %p264, %p265
      %p267 = scmp.ne.s32.totalorder %s256, %s257
      %p268 = scmp.eq.s32.totalorder %s28, 0
      %p269 = por %p267, %p268
      %p270 = scmp.ne.s32.totalorder %s256, %s257
      %p271 = scmp.eq.s32.totalorder %s29, 1
      %p272 = por %p270, %p271
      %p274 = scmp.ne.s32.totalorder %s257, %s273
      %p275 = scmp.eq.s32.totalorder %s29, 0
      %p276 = por %p274, %p275
      %p277 = scmp.le.s32.totalorder 1, %s23
      %p278 = scmp.lt.s32.totalorder %s23, 3
      %p279 = pnand %p277, %p278
      %p280 = pneg %p279
      // Predicated region
      $region9: #{tpu_custom_call.1} parent=5 // pred_check
        _
      $region10: #{tpu_custom_call.1} parent=5 // pred_check_branch
        %282 = sbr.rel (%p279) target = $region12
      $region11: #{tpu_custom_call.1} parent=5 // pred_region
        %s283 = ssub.s32 %s23, 1
        // Predicated region
        $region13: #{tpu_custom_call.1} parent=11 // pred_check
          %p284 = pneg %p89
        $region14: #{tpu_custom_call.1} parent=11 // pred_check_branch
          %286 = sbr.rel (%p284) target = $region16
        $region15: #{tpu_custom_call.1} parent=11 // pred_region
          %s288 = ssub.s32 128, 128
          %289 = vsyncadd [#allocation9], %s288
          %s290 = smul.addr %s32, 128
          %s291 = scalar_lea.hbm %s1, %s290
          %s293 = sshll.u32 [#allocation8], 4
          %s294 = int_to_ptr.vmem [resolvable:$true] %s293
          %296 = dma.hbm_to_vmem [thread:$0]  %s291, 128, %s294, [#allocation9]
        $region16: #{tpu_custom_call.1} parent=11 // pred_fallthru
          _
        // Predicated region
        $region17: #{tpu_custom_call.1} parent=11 // pred_check
          %p297 = pneg %p136
        $region18: #{tpu_custom_call.1} parent=11 // pred_check_branch
          %299 = sbr.rel (%p297) target = $region20
        $region19: #{tpu_custom_call.1} parent=11 // pred_region
          %s301 = ssub.s32 256, 256
          %302 = vsyncadd [#allocation9], %s301
          %s303 = sshll.u32 [#allocation10], 4
          %s304 = int_to_ptr.vmem [resolvable:$true] %s303
          %309 = dma.hbm_to_vmem [thread:$0]  %s3, 256, %s304, [#allocation9], 64, 64, 4
        $region20: #{tpu_custom_call.1} parent=11 // pred_fallthru
          _
        // Predicated region
        $region21: #{tpu_custom_call.1} parent=11 // pred_check
          %p310 = pneg %p157
        $region22: #{tpu_custom_call.1} parent=11 // pred_check_branch
          %312 = sbr.rel (%p310) target = $region24
        $region23: #{tpu_custom_call.1} parent=11 // pred_region
          %s314 = ssub.s32 16, 16
          %315 = vsyncadd [#allocation12], %s314
          %s317 = sshll.u32 [#allocation11], 4
          %s318 = int_to_ptr.vmem [resolvable:$true] %s317
          %320 = dma.hbm_to_vmem [thread:$0]  %s4, 16, %s318, [#allocation12]
        $region24: #{tpu_custom_call.1} parent=11 // pred_fallthru
          _
        // Predicated region
        $region25: #{tpu_custom_call.1} parent=11 // pred_check
          %p321 = pneg %p178
        $region26: #{tpu_custom_call.1} parent=11 // pred_check_branch
          %323 = sbr.rel (%p321) target = $region28
        $region27: #{tpu_custom_call.1} parent=11 // pred_region
          _
        $region28: #{tpu_custom_call.1} parent=11 // pred_fallthru
          _
        // Predicated region
        $region29: #{tpu_custom_call.1} parent=11 // pred_check
          %p324 = pneg %p199
        $region30: #{tpu_custom_call.1} parent=11 // pred_check_branch
          %326 = sbr.rel (%p324) target = $region32
        $region31: #{tpu_custom_call.1} parent=11 // pred_region
          _
        $region32: #{tpu_custom_call.1} parent=11 // pred_fallthru
          _
        // Predicated region
        $region33: #{tpu_custom_call.1} parent=11 // pred_check
          %p327 = pneg %p220
        $region34: #{tpu_custom_call.1} parent=11 // pred_check_branch
          %329 = sbr.rel (%p327) target = $region36
        $region35: #{tpu_custom_call.1} parent=11 // pred_region
          %s331 = ssub.s32 256, 256
          %332 = vsyncadd [#allocation12], %s331
          %s333 = sshll.u32 [#allocation13], 4
          %s334 = int_to_ptr.vmem [resolvable:$true] %s333
          %339 = dma.hbm_to_vmem [thread:$0]  %s7, 256, %s334, [#allocation12], 64, 64, 4
        $region36: #{tpu_custom_call.1} parent=11 // pred_fallthru
          _
        // Predicated region
        $region37: #{tpu_custom_call.1} parent=11 // pred_check
          %p340 = pneg %p241
        $region38: #{tpu_custom_call.1} parent=11 // pred_check_branch
          %342 = sbr.rel (%p340) target = $region40
        $region39: #{tpu_custom_call.1} parent=11 // pred_region
          _
        $region40: #{tpu_custom_call.1} parent=11 // pred_fallthru
          _
      $region12: #{tpu_custom_call.1} parent=5 // pred_fallthru
        _
      %p343 = scmp.lt.s32.totalorder %s23, 2
      // Predicated region
      $region41: #{tpu_custom_call.1} parent=5 // pred_check
        %p344 = pneg %p343
      $region42: #{tpu_custom_call.1} parent=5 // pred_check_branch
        %346 = sbr.rel (%p344) target = $region44
      $region43: #{tpu_custom_call.1} parent=5 // pred_region
        // Predicated region
        $region45: #{tpu_custom_call.1} parent=43 // pred_check
          %p347 = pneg %p57
        $region46: #{tpu_custom_call.1} parent=43 // pred_check_branch
          %349 = sbr.rel (%p347) target = $region48
        $region47: #{tpu_custom_call.1} parent=43 // pred_region
          %s350 = sand.u32 %s47, 1
          %s351 = scalar_lea.sflag [#allocation6], %s350
          %s352 = sand.u32 %s47, 1
          %s353 = smul.addr %s352, 8
          %s354 = scalar_lea.vmem [#allocation5], %s353
          %s356 = ssub.s32 128, 128
          %357 = vsyncadd %s351, %s356
          %s358 = sadd.s32 %s31, %s30
          %s359 = smul.addr %s358, 128
          %s360 = scalar_lea.hbm %s0, %s359
          %s362 = sshll.u32 %s354, 4
          %s363 = int_to_ptr.vmem [resolvable:$true] %s362
          %365 = dma.hbm_to_vmem [thread:$0]  %s360, 128, %s363, %s351
        $region48: #{tpu_custom_call.1} parent=43 // pred_fallthru
          _
        // Predicated region
        $region49: #{tpu_custom_call.1} parent=43 // pred_check
          %p366 = pneg %p109
        $region50: #{tpu_custom_call.1} parent=43 // pred_check_branch
          %368 = sbr.rel (%p366) target = $region52
        $region51: #{tpu_custom_call.1} parent=43 // pred_region
          %p369 = scmp.lt.s32.totalorder %s30, 1
          %s370 = scalar_select %p369, %s30, 1
          %s371 = scalar_lea.vmem %s2, %s370
        $region52: #{tpu_custom_call.1} parent=43 // pred_fallthru
          _
      $region44: #{tpu_custom_call.1} parent=5 // pred_fallthru
        _
      %p372 = scmp.le.s32.totalorder 1, %s23
      %p373 = scmp.lt.s32.totalorder %s23, 3
      %p374 = pnand %p372, %p373
      %p375 = pneg %p374
      // Predicated region
      $region53: #{tpu_custom_call.1} parent=5 // pred_check
        _
      $region54: #{tpu_custom_call.1} parent=5 // pred_check_branch
        %377 = sbr.rel (%p374) target = $region56
      $region55: #{tpu_custom_call.1} parent=5 // pred_region
        %s378 = ssub.s32 %s23, 1
        %s379 = sand.u32 %s50, 1
        %s380 = scalar_lea.sflag [#allocation6], %s379
        %s381 = sand.u32 %s50, 1
        %s382 = smul.addr %s381, 8
        %s383 = scalar_lea.vmem [#allocation5], %s382
        // Predicated region
        $region57: #{tpu_custom_call.1} parent=55 // pred_check
          %p384 = pneg %p63
        $region58: #{tpu_custom_call.1} parent=55 // pred_check_branch
          %386 = sbr.rel (%p384) target = $region60
        $region59: #{tpu_custom_call.1} parent=55 // pred_region
          %387 = dma.done %s380, 128
        $region60: #{tpu_custom_call.1} parent=55 // pred_fallthru
          _
        // Predicated region
        $region61: #{tpu_custom_call.1} parent=55 // pred_check
          %p388 = pneg %p89
        $region62: #{tpu_custom_call.1} parent=55 // pred_check_branch
          %390 = sbr.rel (%p388) target = $region64
        $region63: #{tpu_custom_call.1} parent=55 // pred_region
          %391 = dma.done [#allocation9], 128
        $region64: #{tpu_custom_call.1} parent=55 // pred_fallthru
          _
        // Predicated region
        $region65: #{tpu_custom_call.1} parent=55 // pred_check
          %p392 = pneg %p136
        $region66: #{tpu_custom_call.1} parent=55 // pred_check_branch
          %394 = sbr.rel (%p392) target = $region68
        $region67: #{tpu_custom_call.1} parent=55 // pred_region
          %395 = dma.done [#allocation9], 256
        $region68: #{tpu_custom_call.1} parent=55 // pred_fallthru
          _
        // Predicated region
        $region69: #{tpu_custom_call.1} parent=55 // pred_check
          %p396 = pneg %p157
        $region70: #{tpu_custom_call.1} parent=55 // pred_check_branch
          %398 = sbr.rel (%p396) target = $region72
        $region71: #{tpu_custom_call.1} parent=55 // pred_region
          %399 = dma.done [#allocation12], 16
        $region72: #{tpu_custom_call.1} parent=55 // pred_fallthru
          _
        // Predicated region
        $region73: #{tpu_custom_call.1} parent=55 // pred_check
          %p400 = pneg %p220
        $region74: #{tpu_custom_call.1} parent=55 // pred_check_branch
          %402 = sbr.rel (%p400) target = $region76
        $region75: #{tpu_custom_call.1} parent=55 // pred_region
          %403 = dma.done [#allocation12], 256
        $region76: #{tpu_custom_call.1} parent=55 // pred_fallthru
          _
        %s404 = sand.u32 %s50, 1
        %s405 = scalar_lea.sflag [#allocation6], %s404
        %s406 = sand.u32 %s50, 1
        %s407 = smul.addr %s406, 8
        %s408 = scalar_lea.vmem [#allocation5], %s407
        %p409 = pneg %p63
        %p410 = pneg %p60
        %p411 = pneg %p89
        %p412 = pneg %p86
        %p413 = scmp.lt.s32.totalorder %s32, 1
        %s414 = scalar_select %p413, %s32, 1
        %s415 = scalar_lea.vmem %s2, %s414
        %p416 = pneg %p115
        %p417 = pneg %p112
        %p418 = pneg %p136
        %p419 = pneg %p133
        %p420 = pneg %p157
        %p421 = pneg %p154
        %p422 = pneg %p178
        %p423 = pneg %p175
        %p424 = pneg %p199
        %p425 = pneg %p196
        %p426 = pneg %p220
        %p427 = pneg %p217
        %p428 = pneg %p241
        %p429 = pneg %p238
        %p430 = pneg %p269
        %p431 = pneg %p266
        %s432 = sand.u32 %s256, 1
        %s433 = scalar_lea.sflag [#allocation7], %s432
        %s434 = sand.u32 %s256, 1
        %s435 = smul.addr %s434, 8
        %s436 = scalar_lea.vmem [#allocation14], %s435
        %p437 = scmp.lt.s32.totalorder %s32, 1
        %s438 = scalar_select %p437, %s32, 1
        %s439 = scalar_lea.vmem %s2, %s438
        %p441 = scmp.eq.s32.totalorder %s33, 0
        // Predicated region
        $region77: #{tpu_custom_call.1} parent=55 // pred_check
          %p442 = pneg %p441
        $region78: #{tpu_custom_call.1} parent=55 // pred_check_branch
          %444 = sbr.rel (%p442) target = $region80
        $region79: #{tpu_custom_call.1} parent=55 // pred_region
          %v445 = vld [vmem:[#allocation8] sm:$0xff]
          %v446 = vpack.c.bf16 %v445, %v445
          %v447 = vld [vmem:[%s5] sm:$0xf]
          %v448 = vld [vmem:[%s5 + $0x4] sm:$0xf]
          %v449 = vld [vmem:[%s5 + $0x8] sm:$0xf]
          %v450 = vld [vmem:[%s5 + $0xc] sm:$0xf]
          %v451 = vld [vmem:[%s6] sm:$0x1]
          %v453 = vlaneseq
          %v454 = vshrl.u32 %v453, 7
          %v455 = vsub.s32 0, %v454
          %v456 = vrot.slane %v451, %v455
          %v462 = vunpack.c.l.b16 %v447
          %v463 = vunpack.c.l.b16 %v448
          %v464 = vunpack.c.l.b16 %v449
          %v465 = vunpack.c.l.b16 %v450
          %v466 = vpack.c.b16 %v463, %v462
          %v467 = vpack.c.b16 %v465, %v464
          %vm470 = vcmask 261120
          %v472 = vsel %vm470, %v446, 0
          %474 = vmatprep.subr.bf16.mxu0 0
          %475 = vmatpush1.bf16.msra.mxu0 %v466
          %476 = vmatprep.subr.bf16.mxu0 0
          %477 = vmatpush1.bf16.msra.mxu0 %v467
          %478 = vmatprep.subr.bf16.mxu0 0
          %479 = vmatpush1.bf16.msra.mxu0 0
          %480 = vmatprep.subr.bf16.mxu0 0
          %481 = vmatpush1.bf16.msra.mxu0 0
          %482 = vmatprep.subr.bf16.mxu0 0
          %483 = vmatpush1.bf16.msra.mxu0 0
          %484 = vmatprep.subr.bf16.mxu0 0
          %485 = vmatpush1.bf16.msra.mxu0 0
          %486 = vmatprep.subr.bf16.mxu0 0
          %487 = vmatpush1.bf16.msra.mxu0 0
          %488 = vmatprep.subr.bf16.mxu0 0
          %489 = vmatpush1.bf16.msra.mxu0 0
          %490 = vmatprep.subr.bf16.mxu0 0
          %491 = vmatpush1.bf16.msra.mxu0 0
          %492 = vmatprep.subr.bf16.mxu0 0
          %493 = vmatpush1.bf16.msra.mxu0 0
          %494 = vmatprep.subr.bf16.mxu0 0
          %495 = vmatpush1.bf16.msra.mxu0 0
          %496 = vmatprep.subr.bf16.mxu0 0
          %497 = vmatpush1.bf16.msra.mxu0 0
          %498 = vmatprep.subr.bf16.mxu0 0
          %499 = vmatpush1.bf16.msra.mxu0 0
          %500 = vmatprep.subr.bf16.mxu0 0
          %501 = vmatpush1.bf16.msra.mxu0 0
          %502 = vmatprep.subr.bf16.mxu0 0
          %503 = vmatpush1.bf16.msra.mxu0 0
          %504 = vmatprep.subr.bf16.mxu0 0
          %505 = vmatpush1.bf16.msra.mxu0 0
          %506 = vmatprep.mubr.bf16.mxu0 0
          %507 = vmatmul.mubr.bf16.gmra.mrb[0].mxu0 %v472
          %v508 = vpop.f32.mrb[0].mxu0
          %v509 = vadd.f32 %v456, %v508
          %v510 = vpop.f32.mrb[0].mxu0
          %v511 = vpop.f32.mrb[0].mxu0
          %v512 = vpop.f32.mrb[0].mxu0
          %513 = vdwg.mxu0
          %514 = vxpose.xlu0.b32.start [1/16] %v509, 128
          %515 = vxpose.xlu0.b32.cont [2/16] 0.0, 128
          %516 = vxpose.xlu0.b32.cont [3/16] 0.0, 128
          %517 = vxpose.xlu0.b32.cont [4/16] 0.0, 128
          %518 = vxpose.xlu0.b32.cont [5/16] 0.0, 128
          %519 = vxpose.xlu0.b32.cont [6/16] 0.0, 128
          %520 = vxpose.xlu0.b32.cont [7/16] 0.0, 128
          %521 = vxpose.xlu0.b32.cont [8/16] 0.0, 128
          %522 = vxpose.xlu0.b32.cont [9/16] 0.0, 128
          %523 = vxpose.xlu0.b32.cont [10/16] 0.0, 128
          %524 = vxpose.xlu0.b32.cont [11/16] 0.0, 128
          %525 = vxpose.xlu0.b32.cont [12/16] 0.0, 128
          %526 = vxpose.xlu0.b32.cont [13/16] 0.0, 128
          %527 = vxpose.xlu0.b32.cont [14/16] 0.0, 128
          %528 = vxpose.xlu0.b32.cont [15/16] 0.0, 128
          %529 = vxpose.xlu0.b32.end [16/16] 0.0, 128
          %v530 = vpop.trf.xlu0
          %v531 = vpop.trf.xlu0
          %v532 = vpop.trf.xlu0
          %v533 = vpop.trf.xlu0
          %v534 = vpop.trf.xlu0
          %v535 = vpop.trf.xlu0
          %v536 = vpop.trf.xlu0
          %v537 = vpop.trf.xlu0
          %v538 = vpop.trf.xlu0
          %v539 = vpop.trf.xlu0
          %v540 = vpop.trf.xlu0
          %v541 = vpop.trf.xlu0
          %v542 = vpop.trf.xlu0
          %v543 = vpop.trf.xlu0
          %v544 = vpop.trf.xlu0
          %v545 = vpop.trf.xlu0
          %v546 = vpack.c.bf16 %v531, %v530
          %v547 = vpack.c.bf16 %v533, %v532
          %vm548 = vcmask 64512
          %549 = vst.msk [vmem:[#allocation2] sm:$0xff] %vm548, %v546
          %550 = vst.msk [vmem:[#allocation2 + $0x8] sm:$0xff] %vm548, %v547
          %v551 = vpack.c.bf16 %v509, %v509
          %v553 = vunpack.c.l.b16 %v551
          %v554 = vpack.c.b16 %v553, %v553
          %555 = vrot.lane.b32.xlu0 %v554, 96
          %v556 = vpop.permute.xlu0 %555
          %vm558 = vcmask 257024
          %559 = vst.msk [vmem:[#allocation3] sm:$0xf] %vm558, %v556
        $region80: #{tpu_custom_call.1} parent=55 // pred_fallthru
          _
        %v560 = vld [vmem:[%s383] sm:$0xff]
        %v561 = vpack.c.bf16 %v560, %v560
        %v562 = vld [vmem:[#allocation10] sm:$0xf]
        %v563 = vld [vmem:[#allocation10 + $0x4] sm:$0xf]
        %v564 = vld [vmem:[#allocation10 + $0x8] sm:$0xf]
        %v565 = vld [vmem:[#allocation10 + $0xc] sm:$0xf]
        %v566 = vld [vmem:[#allocation11] sm:$0x1]
        %v568 = vlaneseq
        %v569 = vshrl.u32 %v568, 7
        %v570 = vsub.s32 0, %v569
        %v571 = vrot.slane %v566, %v570
        %v577 = vunpack.c.l.b16 %v562
        %v578 = vunpack.c.l.b16 %v563
        %v579 = vunpack.c.l.b16 %v564
        %v580 = vunpack.c.l.b16 %v565
        %v581 = vpack.c.b16 %v578, %v577
        %v582 = vpack.c.b16 %v580, %v579
        %vm585 = vcmask 261120
        %v587 = vsel %vm585, %v561, 0
        %589 = vmatprep.subr.bf16.mxu0 0
        %590 = vmatpush1.bf16.msra.mxu0 %v581
        %591 = vmatprep.subr.bf16.mxu0 0
        %592 = vmatpush1.bf16.msra.mxu0 %v582
        %593 = vmatprep.subr.bf16.mxu0 0
        %594 = vmatpush1.bf16.msra.mxu0 0
        %595 = vmatprep.subr.bf16.mxu0 0
        %596 = vmatpush1.bf16.msra.mxu0 0
        %597 = vmatprep.subr.bf16.mxu0 0
        %598 = vmatpush1.bf16.msra.mxu0 0
        %599 = vmatprep.subr.bf16.mxu0 0
        %600 = vmatpush1.bf16.msra.mxu0 0
        %601 = vmatprep.subr.bf16.mxu0 0
        %602 = vmatpush1.bf16.msra.mxu0 0
        %603 = vmatprep.subr.bf16.mxu0 0
        %604 = vmatpush1.bf16.msra.mxu0 0
        %605 = vmatprep.subr.bf16.mxu0 0
        %606 = vmatpush1.bf16.msra.mxu0 0
        %607 = vmatprep.subr.bf16.mxu0 0
        %608 = vmatpush1.bf16.msra.mxu0 0
        %609 = vmatprep.subr.bf16.mxu0 0
        %610 = vmatpush1.bf16.msra.mxu0 0
        %611 = vmatprep.subr.bf16.mxu0 0
        %612 = vmatpush1.bf16.msra.mxu0 0
        %613 = vmatprep.subr.bf16.mxu0 0
        %614 = vmatpush1.bf16.msra.mxu0 0
        %615 = vmatprep.subr.bf16.mxu0 0
        %616 = vmatpush1.bf16.msra.mxu0 0
        %617 = vmatprep.subr.bf16.mxu0 0
        %618 = vmatpush1.bf16.msra.mxu0 0
        %619 = vmatprep.subr.bf16.mxu0 0
        %620 = vmatpush1.bf16.msra.mxu0 0
        %621 = vmatprep.mubr.bf16.mxu0 0
        %622 = vmatmul.mubr.bf16.gmra.mrb[0].mxu0 %v587
        %v623 = vpop.f32.mrb[0].mxu0
        %v624 = vadd.f32 %v571, %v623
        %v625 = vpop.f32.mrb[0].mxu0
        %v626 = vpop.f32.mrb[0].mxu0
        %v627 = vpop.f32.mrb[0].mxu0
        %628 = vdwg.mxu0
        %v629 = vmul.f32 %v624, 0.35355338
        %v630 = vpack.c.bf16 %v629, %v629
        %v631 = vld [vmem:[%s439] sm:$0x1]
        %v632 = vsub.f32 %v631, 1.0
        %v633 = vmul.f32 %v632, 1e+09
        %v635 = vlaneseq
        %v636 = vshrl.u32 %v635, 7
        %v637 = vsub.s32 0, %v636
        %v638 = vrot.slane %v633, %v637
        %v641 = vlaneseq
        %v642 = vshrl.u32 %v641, 7
        %v643 = vsub.s32 0, %v642
        %v644 = vrot.slane %v631, %v643
        %v646 = vld [vmem:[#allocation2] sm:$0xf]
        %vm647 = vcmask 64512
        %v649 = vsel %vm647, %v630, 0
        %vm651 = vcmask 1043456
        %v653 = vsel %vm651, %v646, 0
        %655 = vmatprep.subr.bf16.mxu0 0
        %656 = vmatpush1.bf16.msra.mxu0 %v653
        %657 = vmatprep.subr.bf16.mxu0 0
        %658 = vmatpush1.bf16.msra.mxu0 0
        %659 = vmatprep.subr.bf16.mxu0 0
        %660 = vmatpush1.bf16.msra.mxu0 0
        %661 = vmatprep.subr.bf16.mxu0 0
        %662 = vmatpush1.bf16.msra.mxu0 0
        %663 = vmatprep.subr.bf16.mxu0 0
        %664 = vmatpush1.bf16.msra.mxu0 0
        %665 = vmatprep.subr.bf16.mxu0 0
        %666 = vmatpush1.bf16.msra.mxu0 0
        %667 = vmatprep.subr.bf16.mxu0 0
        %668 = vmatpush1.bf16.msra.mxu0 0
        %669 = vmatprep.subr.bf16.mxu0 0
        %670 = vmatpush1.bf16.msra.mxu0 0
        %671 = vmatprep.subr.bf16.mxu0 0
        %672 = vmatpush1.bf16.msra.mxu0 0
        %673 = vmatprep.subr.bf16.mxu0 0
        %674 = vmatpush1.bf16.msra.mxu0 0
        %675 = vmatprep.subr.bf16.mxu0 0
        %676 = vmatpush1.bf16.msra.mxu0 0
        %677 = vmatprep.subr.bf16.mxu0 0
        %678 = vmatpush1.bf16.msra.mxu0 0
        %679 = vmatprep.subr.bf16.mxu0 0
        %680 = vmatpush1.bf16.msra.mxu0 0
        %681 = vmatprep.subr.bf16.mxu0 0
        %682 = vmatpush1.bf16.msra.mxu0 0
        %683 = vmatprep.subr.bf16.mxu0 0
        %684 = vmatpush1.bf16.msra.mxu0 0
        %685 = vmatprep.subr.bf16.mxu0 0
        %686 = vmatpush1.bf16.msra.mxu0 0
        %687 = vmatprep.mubr.bf16.mxu0 0
        %688 = vmatmul.mubr.bf16.gmra.mrb[0].mxu0 %v649
        %v689 = vpop.f32.mrb[0].mxu0
        %v690 = vadd.f32 %v638, %v689
        %v691 = vpop.f32.mrb[0].mxu0
        %v692 = vpop.f32.mrb[0].mxu0
        %v693 = vpop.f32.mrb[0].mxu0
        %694 = vdwg.mxu0
        %v695 = vsel %vm647, %v690, -inf
        %696 = vmax.xlane.f32.xlu0 %v695
        %v697 = vpop.xlane.xlu0 %696
        %v698 = vsub.f32 %v690, %v697
        %v699 = vmul.f32 %v698, 1.442695
        %v700 = vpow.pop %v699
        %v701 = vsel %vm647, %v700, 0.0
        %702 = vadd.xlane.f32.xlu0 %v701
        %v703 = vpop.xlane.xlu0 %702
        %v704 = vrcp.pop %v703
        %v705 = vmul.f32 %v700, %v704
        %v706 = vmul.f32 %v705, %v644
        %v707 = vpack.c.bf16 %v706, %v706
        %v708 = vld [vmem:[#allocation3] sm:$0xf]
        %v710 = vsel %vm647, %v707, 0
        %v713 = vsel %vm651, %v708, 0
        %715 = vmatprep.subr.bf16.mxu0 0
        %716 = vmatpush1.bf16.msra.mxu0 %v713
        %717 = vmatprep.subr.bf16.mxu0 0
        %718 = vmatpush1.bf16.msra.mxu0 0
        %719 = vmatprep.subr.bf16.mxu0 0
        %720 = vmatpush1.bf16.msra.mxu0 0
        %721 = vmatprep.subr.bf16.mxu0 0
        %722 = vmatpush1.bf16.msra.mxu0 0
        %723 = vmatprep.subr.bf16.mxu0 0
        %724 = vmatpush1.bf16.msra.mxu0 0
        %725 = vmatprep.subr.bf16.mxu0 0
        %726 = vmatpush1.bf16.msra.mxu0 0
        %727 = vmatprep.subr.bf16.mxu0 0
        %728 = vmatpush1.bf16.msra.mxu0 0
        %729 = vmatprep.subr.bf16.mxu0 0
        %730 = vmatpush1.bf16.msra.mxu0 0
        %731 = vmatprep.subr.bf16.mxu0 0
        %732 = vmatpush1.bf16.msra.mxu0 0
        %733 = vmatprep.subr.bf16.mxu0 0
        %734 = vmatpush1.bf16.msra.mxu0 0
        %735 = vmatprep.subr.bf16.mxu0 0
        %736 = vmatpush1.bf16.msra.mxu0 0
        %737 = vmatprep.subr.bf16.mxu0 0
        %738 = vmatpush1.bf16.msra.mxu0 0
        %739 = vmatprep.subr.bf16.mxu0 0
        %740 = vmatpush1.bf16.msra.mxu0 0
        %741 = vmatprep.subr.bf16.mxu0 0
        %742 = vmatpush1.bf16.msra.mxu0 0
        %743 = vmatprep.subr.bf16.mxu0 0
        %744 = vmatpush1.bf16.msra.mxu0 0
        %745 = vmatprep.subr.bf16.mxu0 0
        %746 = vmatpush1.bf16.msra.mxu0 0
        %747 = vmatprep.mubr.bf16.mxu0 0
        %748 = vmatmul.mubr.bf16.gmra.mrb[0].mxu0 %v710
        %v749 = vpop.f32.mrb[0].mxu0
        %v750 = vadd.f32 0.0, %v749
        %v751 = vpop.f32.mrb[0].mxu0
        %v752 = vpop.f32.mrb[0].mxu0
        %v753 = vpop.f32.mrb[0].mxu0
        %754 = vdwg.mxu0
        %v755 = vpack.c.bf16 %v750, %v750
        %vm756 = vcmask 60416
        %757 = vst.msk [vmem:[#allocation4] sm:$0xf] %vm756, %v755
        %v758 = vld [vmem:[#allocation2] sm:$0xf0]
        %760 = vrot.lane.b32.xlu0 %v630, 120
        %v761 = vpop.permute.xlu0 %760
        %v763 = vrot.slane %v758, 4
        %v765 = vsel %vm647, %v761, 0
        %v768 = vsel %vm651, %v763, 0
        %770 = vmatprep.subr.bf16.mxu0 0
        %771 = vmatpush1.bf16.msra.mxu0 %v768
        %772 = vmatprep.subr.bf16.mxu0 0
        %773 = vmatpush1.bf16.msra.mxu0 0
        %774 = vmatprep.subr.bf16.mxu0 0
        %775 = vmatpush1.bf16.msra.mxu0 0
        %776 = vmatprep.subr.bf16.mxu0 0
        %777 = vmatpush1.bf16.msra.mxu0 0
        %778 = vmatprep.subr.bf16.mxu0 0
        %779 = vmatpush1.bf16.msra.mxu0 0
        %780 = vmatprep.subr.bf16.mxu0 0
        %781 = vmatpush1.bf16.msra.mxu0 0
        %782 = vmatprep.subr.bf16.mxu0 0
        %783 = vmatpush1.bf16.msra.mxu0 0
        %784 = vmatprep.subr.bf16.mxu0 0
        %785 = vmatpush1.bf16.msra.mxu0 0
        %786 = vmatprep.subr.bf16.mxu0 0
        %787 = vmatpush1.bf16.msra.mxu0 0
        %788 = vmatprep.subr.bf16.mxu0 0
        %789 = vmatpush1.bf16.msra.mxu0 0
        %790 = vmatprep.subr.bf16.mxu0 0
        %791 = vmatpush1.bf16.msra.mxu0 0
        %792 = vmatprep.subr.bf16.mxu0 0
        %793 = vmatpush1.bf16.msra.mxu0 0
        %794 = vmatprep.subr.bf16.mxu0 0
        %795 = vmatpush1.bf16.msra.mxu0 0
        %796 = vmatprep.subr.bf16.mxu0 0
        %797 = vmatpush1.bf16.msra.mxu0 0
        %798 = vmatprep.subr.bf16.mxu0 0
        %799 = vmatpush1.bf16.msra.mxu0 0
        %800 = vmatprep.subr.bf16.mxu0 0
        %801 = vmatpush1.bf16.msra.mxu0 0
        %802 = vmatprep.mubr.bf16.mxu0 0
        %803 = vmatmul.mubr.bf16.gmra.mrb[0].mxu0 %v765
        %v804 = vpop.f32.mrb[0].mxu0
        %v805 = vadd.f32 %v638, %v804
        %v806 = vpop.f32.mrb[0].mxu0
        %v807 = vpop.f32.mrb[0].mxu0
        %v808 = vpop.f32.mrb[0].mxu0
        %809 = vdwg.mxu0
        %v810 = vsel %vm647, %v805, -inf
        %811 = vmax.xlane.f32.xlu0 %v810
        %v812 = vpop.xlane.xlu0 %811
        %v813 = vsub.f32 %v805, %v812
        %v814 = vmul.f32 %v813, 1.442695
        %v815 = vpow.pop %v814
        %v816 = vsel %vm647, %v815, 0.0
        %817 = vadd.xlane.f32.xlu0 %v816
        %v818 = vpop.xlane.xlu0 %817
        %v819 = vrcp.pop %v818
        %v820 = vmul.f32 %v815, %v819
        %v821 = vmul.f32 %v820, %v644
        %v822 = vpack.c.bf16 %v821, %v821
        %v823 = vld [vmem:[#allocation3] sm:$0xf]
        %v825 = vunpack.c.l.b16 %v823
        %v826 = vpack.c.b16 %v825, %v825
        %827 = vrot.lane.b32.xlu0 %v826, 120
        %v828 = vpop.permute.xlu0 %827
        %v830 = vsel %vm647, %v822, 0
        %v833 = vsel %vm651, %v828, 0
        %835 = vmatprep.subr.bf16.mxu0 0
        %836 = vmatpush1.bf16.msra.mxu0 %v833
        %837 = vmatprep.subr.bf16.mxu0 0
        %838 = vmatpush1.bf16.msra.mxu0 0
        %839 = vmatprep.subr.bf16.mxu0 0
        %840 = vmatpush1.bf16.msra.mxu0 0
        %841 = vmatprep.subr.bf16.mxu0 0
        %842 = vmatpush1.bf16.msra.mxu0 0
        %843 = vmatprep.subr.bf16.mxu0 0
        %844 = vmatpush1.bf16.msra.mxu0 0
        %845 = vmatprep.subr.bf16.mxu0 0
        %846 = vmatpush1.bf16.msra.mxu0 0
        %847 = vmatprep.subr.bf16.mxu0 0
        %848 = vmatpush1.bf16.msra.mxu0 0
        %849 = vmatprep.subr.bf16.mxu0 0
        %850 = vmatpush1.bf16.msra.mxu0 0
        %851 = vmatprep.subr.bf16.mxu0 0
        %852 = vmatpush1.bf16.msra.mxu0 0
        %853 = vmatprep.subr.bf16.mxu0 0
        %854 = vmatpush1.bf16.msra.mxu0 0
        %855 = vmatprep.subr.bf16.mxu0 0
        %856 = vmatpush1.bf16.msra.mxu0 0
        %857 = vmatprep.subr.bf16.mxu0 0
        %858 = vmatpush1.bf16.msra.mxu0 0
        %859 = vmatprep.subr.bf16.mxu0 0
        %860 = vmatpush1.bf16.msra.mxu0 0
        %861 = vmatprep.subr.bf16.mxu0 0
        %862 = vmatpush1.bf16.msra.mxu0 0
        %863 = vmatprep.subr.bf16.mxu0 0
        %864 = vmatpush1.bf16.msra.mxu0 0
        %865 = vmatprep.subr.bf16.mxu0 0
        %866 = vmatpush1.bf16.msra.mxu0 0
        %867 = vmatprep.mubr.bf16.mxu0 0
        %868 = vmatmul.mubr.bf16.gmra.mrb[0].mxu0 %v830
        %v869 = vpop.f32.mrb[0].mxu0
        %v870 = vadd.f32 0.0, %v869
        %v871 = vpop.f32.mrb[0].mxu0
        %v872 = vpop.f32.mrb[0].mxu0
        %v873 = vpop.f32.mrb[0].mxu0
        %874 = vdwg.mxu0
        %v875 = vpack.c.bf16 %v870, %v870
        %v877 = vunpack.c.l.b16 %v875
        %v878 = vpack.c.b16 %v877, %v877
        %879 = vrot.lane.b32.xlu0 %v878, 8
        %v880 = vpop.permute.xlu0 %879
        %vm882 = vcmask 126016
        %883 = vst.msk [vmem:[#allocation4] sm:$0xf] %vm882, %v880
        %v884 = vld [vmem:[#allocation2 + $0x8] sm:$0xf]
        %885 = vrot.lane.b32.xlu0 %v630, 112
        %v886 = vpop.permute.xlu0 %885
        %v888 = vsel %vm647, %v886, 0
        %v891 = vsel %vm651, %v884, 0
        %893 = vmatprep.subr.bf16.mxu0 0
        %894 = vmatpush1.bf16.msra.mxu0 %v891
        %895 = vmatprep.subr.bf16.mxu0 0
        %896 = vmatpush1.bf16.msra.mxu0 0
        %897 = vmatprep.subr.bf16.mxu0 0
        %898 = vmatpush1.bf16.msra.mxu0 0
        %899 = vmatprep.subr.bf16.mxu0 0
        %900 = vmatpush1.bf16.msra.mxu0 0
        %901 = vmatprep.subr.bf16.mxu0 0
        %902 = vmatpush1.bf16.msra.mxu0 0
        %903 = vmatprep.subr.bf16.mxu0 0
        %904 = vmatpush1.bf16.msra.mxu0 0
        %905 = vmatprep.subr.bf16.mxu0 0
        %906 = vmatpush1.bf16.msra.mxu0 0
        %907 = vmatprep.subr.bf16.mxu0 0
        %908 = vmatpush1.bf16.msra.mxu0 0
        %909 = vmatprep.subr.bf16.mxu0 0
        %910 = vmatpush1.bf16.msra.mxu0 0
        %911 = vmatprep.subr.bf16.mxu0 0
        %912 = vmatpush1.bf16.msra.mxu0 0
        %913 = vmatprep.subr.bf16.mxu0 0
        %914 = vmatpush1.bf16.msra.mxu0 0
        %915 = vmatprep.subr.bf16.mxu0 0
        %916 = vmatpush1.bf16.msra.mxu0 0
        %917 = vmatprep.subr.bf16.mxu0 0
        %918 = vmatpush1.bf16.msra.mxu0 0
        %919 = vmatprep.subr.bf16.mxu0 0
        %920 = vmatpush1.bf16.msra.mxu0 0
        %921 = vmatprep.subr.bf16.mxu0 0
        %922 = vmatpush1.bf16.msra.mxu0 0
        %923 = vmatprep.subr.bf16.mxu0 0
        %924 = vmatpush1.bf16.msra.mxu0 0
        %925 = vmatprep.mubr.bf16.mxu0 0
        %926 = vmatmul.mubr.bf16.gmra.mrb[0].mxu0 %v888
        %v927 = vpop.f32.mrb[0].mxu0
        %v928 = vadd.f32 %v638, %v927
        %v929 = vpop.f32.mrb[0].mxu0
        %v930 = vpop.f32.mrb[0].mxu0
        %v931 = vpop.f32.mrb[0].mxu0
        %932 = vdwg.mxu0
        %v933 = vsel %vm647, %v928, -inf
        %934 = vmax.xlane.f32.xlu0 %v933
        %v935 = vpop.xlane.xlu0 %934
        %v936 = vsub.f32 %v928, %v935
        %v937 = vmul.f32 %v936, 1.442695
        %v938 = vpow.pop %v937
        %v939 = vsel %vm647, %v938, 0.0
        %940 = vadd.xlane.f32.xlu0 %v939
        %v941 = vpop.xlane.xlu0 %940
        %v942 = vrcp.pop %v941
        %v943 = vmul.f32 %v938, %v942
        %v944 = vmul.f32 %v943, %v644
        %v945 = vpack.c.bf16 %v944, %v944
        %v946 = vld [vmem:[#allocation3] sm:$0xf]
        %v948 = vunpack.c.l.b16 %v946
        %v949 = vpack.c.b16 %v948, %v948
        %950 = vrot.lane.b32.xlu0 %v949, 112
        %v951 = vpop.permute.xlu0 %950
        %v953 = vsel %vm647, %v945, 0
        %v956 = vsel %vm651, %v951, 0
        %958 = vmatprep.subr.bf16.mxu0 0
        %959 = vmatpush1.bf16.msra.mxu0 %v956
        %960 = vmatprep.subr.bf16.mxu0 0
        %961 = vmatpush1.bf16.msra.mxu0 0
        %962 = vmatprep.subr.bf16.mxu0 0
        %963 = vmatpush1.bf16.msra.mxu0 0
        %964 = vmatprep.subr.bf16.mxu0 0
        %965 = vmatpush1.bf16.msra.mxu0 0
        %966 = vmatprep.subr.bf16.mxu0 0
        %967 = vmatpush1.bf16.msra.mxu0 0
        %968 = vmatprep.subr.bf16.mxu0 0
        %969 = vmatpush1.bf16.msra.mxu0 0
        %970 = vmatprep.subr.bf16.mxu0 0
        %971 = vmatpush1.bf16.msra.mxu0 0
        %972 = vmatprep.subr.bf16.mxu0 0
        %973 = vmatpush1.bf16.msra.mxu0 0
        %974 = vmatprep.subr.bf16.mxu0 0
        %975 = vmatpush1.bf16.msra.mxu0 0
        %976 = vmatprep.subr.bf16.mxu0 0
        %977 = vmatpush1.bf16.msra.mxu0 0
        %978 = vmatprep.subr.bf16.mxu0 0
        %979 = vmatpush1.bf16.msra.mxu0 0
        %980 = vmatprep.subr.bf16.mxu0 0
        %981 = vmatpush1.bf16.msra.mxu0 0
        %982 = vmatprep.subr.bf16.mxu0 0
        %983 = vmatpush1.bf16.msra.mxu0 0
        %984 = vmatprep.subr.bf16.mxu0 0
        %985 = vmatpush1.bf16.msra.mxu0 0
        %986 = vmatprep.subr.bf16.mxu0 0
        %987 = vmatpush1.bf16.msra.mxu0 0
        %988 = vmatprep.subr.bf16.mxu0 0
        %989 = vmatpush1.bf16.msra.mxu0 0
        %990 = vmatprep.mubr.bf16.mxu0 0
        %991 = vmatmul.mubr.bf16.gmra.mrb[0].mxu0 %v953
        %v992 = vpop.f32.mrb[0].mxu0
        %v993 = vadd.f32 0.0, %v992
        %v994 = vpop.f32.mrb[0].mxu0
        %v995 = vpop.f32.mrb[0].mxu0
        %v996 = vpop.f32.mrb[0].mxu0
        %997 = vdwg.mxu0
        %v998 = vpack.c.bf16 %v993, %v993
        %v1000 = vunpack.c.l.b16 %v998
        %v1001 = vpack.c.b16 %v1000, %v1000
        %1002 = vrot.lane.b32.xlu0 %v1001, 16
        %v1003 = vpop.permute.xlu0 %1002
        %vm1005 = vcmask 191616
        %1006 = vst.msk [vmem:[#allocation4] sm:$0xf] %vm1005, %v1003
        %v1007 = vld [vmem:[#allocation2 + $0x8] sm:$0xf0]
        %1008 = vrot.lane.b32.xlu0 %v630, 104
        %v1009 = vpop.permute.xlu0 %1008
        %v1011 = vrot.slane %v1007, 4
        %v1013 = vsel %vm647, %v1009, 0
        %v1016 = vsel %vm651, %v1011, 0
        %1018 = vmatprep.subr.bf16.mxu0 0
        %1019 = vmatpush1.bf16.msra.mxu0 %v1016
        %1020 = vmatprep.subr.bf16.mxu0 0
        %1021 = vmatpush1.bf16.msra.mxu0 0
        %1022 = vmatprep.subr.bf16.mxu0 0
        %1023 = vmatpush1.bf16.msra.mxu0 0
        %1024 = vmatprep.subr.bf16.mxu0 0
        %1025 = vmatpush1.bf16.msra.mxu0 0
        %1026 = vmatprep.subr.bf16.mxu0 0
        %1027 = vmatpush1.bf16.msra.mxu0 0
        %1028 = vmatprep.subr.bf16.mxu0 0
        %1029 = vmatpush1.bf16.msra.mxu0 0
        %1030 = vmatprep.subr.bf16.mxu0 0
        %1031 = vmatpush1.bf16.msra.mxu0 0
        %1032 = vmatprep.subr.bf16.mxu0 0
        %1033 = vmatpush1.bf16.msra.mxu0 0
        %1034 = vmatprep.subr.bf16.mxu0 0
        %1035 = vmatpush1.bf16.msra.mxu0 0
        %1036 = vmatprep.subr.bf16.mxu0 0
        %1037 = vmatpush1.bf16.msra.mxu0 0
        %1038 = vmatprep.subr.bf16.mxu0 0
        %1039 = vmatpush1.bf16.msra.mxu0 0
        %1040 = vmatprep.subr.bf16.mxu0 0
        %1041 = vmatpush1.bf16.msra.mxu0 0
        %1042 = vmatprep.subr.bf16.mxu0 0
        %1043 = vmatpush1.bf16.msra.mxu0 0
        %1044 = vmatprep.subr.bf16.mxu0 0
        %1045 = vmatpush1.bf16.msra.mxu0 0
        %1046 = vmatprep.subr.bf16.mxu0 0
        %1047 = vmatpush1.bf16.msra.mxu0 0
        %1048 = vmatprep.subr.bf16.mxu0 0
        %1049 = vmatpush1.bf16.msra.mxu0 0
        %1050 = vmatprep.mubr.bf16.mxu0 0
        %1051 = vmatmul.mubr.bf16.gmra.mrb[0].mxu0 %v1013
        %v1052 = vpop.f32.mrb[0].mxu0
        %v1053 = vadd.f32 %v638, %v1052
        %v1054 = vpop.f32.mrb[0].mxu0
        %v1055 = vpop.f32.mrb[0].mxu0
        %v1056 = vpop.f32.mrb[0].mxu0
        %1057 = vdwg.mxu0
        %v1058 = vsel %vm647, %v1053, -inf
        %1059 = vmax.xlane.f32.xlu0 %v1058
        %v1060 = vpop.xlane.xlu0 %1059
        %v1061 = vsub.f32 %v1053, %v1060
        %v1062 = vmul.f32 %v1061, 1.442695
        %v1063 = vpow.pop %v1062
        %v1064 = vsel %vm647, %v1063, 0.0
        %1065 = vadd.xlane.f32.xlu0 %v1064
        %v1066 = vpop.xlane.xlu0 %1065
        %v1067 = vrcp.pop %v1066
        %v1068 = vmul.f32 %v1063, %v1067
        %v1069 = vmul.f32 %v1068, %v644
        %v1070 = vpack.c.bf16 %v1069, %v1069
        %v1071 = vld [vmem:[#allocation3] sm:$0xf]
        %v1073 = vunpack.c.l.b16 %v1071
        %v1074 = vpack.c.b16 %v1073, %v1073
        %1075 = vrot.lane.b32.xlu0 %v1074, 104
        %v1076 = vpop.permute.xlu0 %1075
        %v1078 = vsel %vm647, %v1070, 0
        %v1081 = vsel %vm651, %v1076, 0
        %1083 = vmatprep.subr.bf16.mxu0 0
        %1084 = vmatpush1.bf16.msra.mxu0 %v1081
        %1085 = vmatprep.subr.bf16.mxu0 0
        %1086 = vmatpush1.bf16.msra.mxu0 0
        %1087 = vmatprep.subr.bf16.mxu0 0
        %1088 = vmatpush1.bf16.msra.mxu0 0
        %1089 = vmatprep.subr.bf16.mxu0 0
        %1090 = vmatpush1.bf16.msra.mxu0 0
        %1091 = vmatprep.subr.bf16.mxu0 0
        %1092 = vmatpush1.bf16.msra.mxu0 0
        %1093 = vmatprep.subr.bf16.mxu0 0
        %1094 = vmatpush1.bf16.msra.mxu0 0
        %1095 = vmatprep.subr.bf16.mxu0 0
        %1096 = vmatpush1.bf16.msra.mxu0 0
        %1097 = vmatprep.subr.bf16.mxu0 0
        %1098 = vmatpush1.bf16.msra.mxu0 0
        %1099 = vmatprep.subr.bf16.mxu0 0
        %1100 = vmatpush1.bf16.msra.mxu0 0
        %1101 = vmatprep.subr.bf16.mxu0 0
        %1102 = vmatpush1.bf16.msra.mxu0 0
        %1103 = vmatprep.subr.bf16.mxu0 0
        %1104 = vmatpush1.bf16.msra.mxu0 0
        %1105 = vmatprep.subr.bf16.mxu0 0
        %1106 = vmatpush1.bf16.msra.mxu0 0
        %1107 = vmatprep.subr.bf16.mxu0 0
        %1108 = vmatpush1.bf16.msra.mxu0 0
        %1109 = vmatprep.subr.bf16.mxu0 0
        %1110 = vmatpush1.bf16.msra.mxu0 0
        %1111 = vmatprep.subr.bf16.mxu0 0
        %1112 = vmatpush1.bf16.msra.mxu0 0
        %1113 = vmatprep.subr.bf16.mxu0 0
        %1114 = vmatpush1.bf16.msra.mxu0 0
        %1115 = vmatprep.mubr.bf16.mxu0 0
        %1116 = vmatmul.mubr.bf16.gmra.mrb[0].mxu0 %v1078
        %v1117 = vpop.f32.mrb[0].mxu0
        %v1118 = vadd.f32 0.0, %v1117
        %v1119 = vpop.f32.mrb[0].mxu0
        %v1120 = vpop.f32.mrb[0].mxu0
        %v1121 = vpop.f32.mrb[0].mxu0
        %1122 = vdwg.mxu0
        %v1123 = vpack.c.bf16 %v1118, %v1118
        %v1125 = vunpack.c.l.b16 %v1123
        %v1126 = vpack.c.b16 %v1125, %v1125
        %1127 = vrot.lane.b32.xlu0 %v1126, 24
        %v1128 = vpop.permute.xlu0 %1127
        %vm1130 = vcmask 257216
        %1131 = vst.msk [vmem:[#allocation4] sm:$0xf] %vm1130, %v1128
        %v1132 = vld [vmem:[#allocation4] sm:$0xf]
        %v1133 = vld [vmem:[#allocation13] sm:$0xf]
        %v1134 = vld [vmem:[#allocation13 + $0x4] sm:$0xf]
        %v1135 = vld [vmem:[#allocation13 + $0x8] sm:$0xf]
        %v1136 = vld [vmem:[#allocation13 + $0xc] sm:$0xf]
        %v1137 = vld [vmem:[%s8] sm:$0x1]
        %v1139 = vlaneseq
        %v1140 = vshrl.u32 %v1139, 7
        %v1141 = vsub.s32 0, %v1140
        %v1142 = vrot.slane %v1137, %v1141
        %v1148 = vunpack.c.l.b16 %v1133
        %v1149 = vunpack.c.l.b16 %v1134
        %v1150 = vunpack.c.l.b16 %v1135
        %v1151 = vunpack.c.l.b16 %v1136
        %v1152 = vpack.c.b16 %v1149, %v1148
        %v1153 = vpack.c.b16 %v1151, %v1150
        %v1157 = vsel %vm585, %v1132, 0
        %1159 = vmatprep.subr.bf16.mxu0 0
        %1160 = vmatpush1.bf16.msra.mxu0 %v1152
        %1161 = vmatprep.subr.bf16.mxu0 0
        %1162 = vmatpush1.bf16.msra.mxu0 %v1153
        %1163 = vmatprep.subr.bf16.mxu0 0
        %1164 = vmatpush1.bf16.msra.mxu0 0
        %1165 = vmatprep.subr.bf16.mxu0 0
        %1166 = vmatpush1.bf16.msra.mxu0 0
        %1167 = vmatprep.subr.bf16.mxu0 0
        %1168 = vmatpush1.bf16.msra.mxu0 0
        %1169 = vmatprep.subr.bf16.mxu0 0
        %1170 = vmatpush1.bf16.msra.mxu0 0
        %1171 = vmatprep.subr.bf16.mxu0 0
        %1172 = vmatpush1.bf16.msra.mxu0 0
        %1173 = vmatprep.subr.bf16.mxu0 0
        %1174 = vmatpush1.bf16.msra.mxu0 0
        %1175 = vmatprep.subr.bf16.mxu0 0
        %1176 = vmatpush1.bf16.msra.mxu0 0
        %1177 = vmatprep.subr.bf16.mxu0 0
        %1178 = vmatpush1.bf16.msra.mxu0 0
        %1179 = vmatprep.subr.bf16.mxu0 0
        %1180 = vmatpush1.bf16.msra.mxu0 0
        %1181 = vmatprep.subr.bf16.mxu0 0
        %1182 = vmatpush1.bf16.msra.mxu0 0
        %1183 = vmatprep.subr.bf16.mxu0 0
        %1184 = vmatpush1.bf16.msra.mxu0 0
        %1185 = vmatprep.subr.bf16.mxu0 0
        %1186 = vmatpush1.bf16.msra.mxu0 0
        %1187 = vmatprep.subr.bf16.mxu0 0
        %1188 = vmatpush1.bf16.msra.mxu0 0
        %1189 = vmatprep.subr.bf16.mxu0 0
        %1190 = vmatpush1.bf16.msra.mxu0 0
        %1191 = vmatprep.mubr.bf16.mxu0 0
        %1192 = vmatmul.mubr.bf16.gmra.mrb[0].mxu0 %v1157
        %v1193 = vpop.f32.mrb[0].mxu0
        %v1194 = vadd.f32 %v1142, %v1193
        %v1195 = vpop.f32.mrb[0].mxu0
        %v1196 = vpop.f32.mrb[0].mxu0
        %v1197 = vpop.f32.mrb[0].mxu0
        %1198 = vdwg.mxu0
        %1199 = vst.msk [vmem:[%s436] sm:$0xff] %vm585, %v1194
        %s1200 = sand.u32 %s256, 1
        %s1201 = scalar_lea.sflag [#allocation7], %s1200
        %s1202 = sand.u32 %s256, 1
        %s1203 = smul.addr %s1202, 8
        %s1204 = scalar_lea.vmem [#allocation14], %s1203
        // Predicated region
        $region81: #{tpu_custom_call.1} parent=55 // pred_check
          %p1205 = pneg %p266
        $region82: #{tpu_custom_call.1} parent=55 // pred_check_branch
          %1207 = sbr.rel (%p1205) target = $region84
        $region83: #{tpu_custom_call.1} parent=55 // pred_region
          %s1209 = ssub.s32 128, 128
          %1210 = vsyncadd %s1201, %s1209
          %s1211 = sadd.s32 %s33, %s32
          %s1212 = smul.addr %s1211, 128
          %s1213 = scalar_lea.hbm %s9, %s1212
          %s1215 = sshll.u32 %s1204, 4
          %s1216 = int_to_ptr.vmem [resolvable:$true] %s1215
          %1218 = dma.vmem_to_hbm [thread:$0]  %s1216, 128, %s1213, %s1201
        $region84: #{tpu_custom_call.1} parent=55 // pred_fallthru
          _
      $region56: #{tpu_custom_call.1} parent=5 // pred_fallthru
        _
      %p1219 = scmp.le.s32.totalorder 2, %s23
      // Predicated region
      $region85: #{tpu_custom_call.1} parent=5 // pred_check
        %p1220 = pneg %p1219
      $region86: #{tpu_custom_call.1} parent=5 // pred_check_branch
        %1222 = sbr.rel (%p1220) target = $region88
      $region87: #{tpu_custom_call.1} parent=5 // pred_region
        %s1223 = ssub.s32 %s23, 2
        // Predicated region
        $region89: #{tpu_custom_call.1} parent=87 // pred_check
          %p1224 = pneg %p272
        $region90: #{tpu_custom_call.1} parent=87 // pred_check_branch
          %1226 = sbr.rel (%p1224) target = $region92
        $region91: #{tpu_custom_call.1} parent=87 // pred_region
          %s1227 = sand.u32 %s257, 1
          %s1228 = scalar_lea.sflag [#allocation7], %s1227
          %s1229 = sand.u32 %s257, 1
          %s1230 = smul.addr %s1229, 8
          %s1231 = scalar_lea.vmem [#allocation14], %s1230
          %1232 = dma.done %s1228, 128
        $region92: #{tpu_custom_call.1} parent=87 // pred_fallthru
          _
      $region88: #{tpu_custom_call.1} parent=5 // pred_fallthru
        _
    $region6: #{tpu_custom_call.1} parent=1 // loop_footer
      %s27 = sadd.s32 1, %s23
    $region7: #{tpu_custom_call.1} parent=1 // loop_footer_branch
      %22 = sbr.rel target = $region3
    $region8: #{tpu_custom_call.1} parent=1 // loop_exit
      _
    %1233 = vsyncpa [#allocation6], 1
    %s1234 = scalar_lea.sflag [#allocation6], 1
    %1235 = vsyncpa %s1234, 1
    %1236 = vsyncpa [#allocation9], 1
    %1237 = vsyncpa [#allocation12], 1
    %1238 = vsyncpa [#allocation7], 1
    %s1239 = scalar_lea.sflag [#allocation7], 1
    %1240 = vsyncpa %s1239, 1

</llo_original>
